<compile_context>
chip_gen: v7x
topology: tpu7x:2x2x1
jax: 0.10.0
libtpu: 0.0.40
codegen_flags: <defaults>
</compile_context>

<pallas_src>
import jax
import jax.numpy as jnp
import numpy as np
from jax.experimental import pallas as pl
from jax.experimental.pallas import tpu as pltpu

BN_EPS = 1e-5
NEG_SLOPE = 0.1

_TM = 512                      # row-tile target for large M
_VMEM_LIMIT = 32 * 1024 * 1024


def _round_up(x, m):
    return (x + m - 1) // m * m


# ---- module-level index maps (stable identities help compile caching) ----- #
def _idx_lhs(i, j, k):
    return (i, k)


def _idx_rhs(i, j, k):
    return (k, j)


def _idx_out3(i, j, k):
    return (i, j)


def _idx_stats(i, j, k):
    return (i, 0, j)


def _idx_tile(i, j):
    return (i, j)


def _idx_vec(i, j):
    return (0, j)


# ----------------------------- Pallas kernels ------------------------------ #

def _matmul_stats_kernel(p_ref, w_ref, o_ref, s_ref, acc_ref):
    """Pass 1: K-tiled matmul (bf16 in, f32 acc, bf16 out) + BN partial sums."""
    @pl.when(pl.program_id(2) == 0)
    def _init():
        acc_ref[...] = jnp.zeros_like(acc_ref)

    acc_ref[...] += jnp.dot(p_ref[...], w_ref[...],
                            preferred_element_type=jnp.float32)

    @pl.when(pl.program_id(2) == pl.num_programs(2) - 1)
    def _finalize():
        acc = acc_ref[...]
        o_ref[...] = acc.astype(o_ref.dtype)
        # Direct slice stores of the per-tile partial stats (no concat temp).
        s_ref[:, 0:1, :] = jnp.sum(acc, axis=0, keepdims=True)[None]
        s_ref[:, 1:2, :] = jnp.sum(acc * acc, axis=0, keepdims=True)[None]


def _bn_lrelu_kernel(x_ref, sc_ref, sh_ref, o_ref):
    """Pass 2: folded BatchNorm (scale/shift) + LeakyReLU(0.1)."""
    y = x_ref[...].astype(jnp.float32) * sc_ref[...] + sh_ref[...]
    o_ref[...] = jnp.maximum(y, NEG_SLOPE * y).astype(o_ref.dtype)


def _bn_lrelu_add_kernel(x_ref, sc_ref, sh_ref, r_ref, o_ref):
    """Pass 2 with ResLayer skip connection: x + LeakyReLU(BN(conv))."""
    y = x_ref[...].astype(jnp.float32) * sc_ref[...] + sh_ref[...]
    y = jnp.maximum(y, NEG_SLOPE * y)
    o_ref[...] = (y + r_ref[...].astype(jnp.float32)).astype(o_ref.dtype)


# --------------------------- pallas_call wrappers --------------------------- #

def _conv_matmul_stats(patches, wmat, tm, tk, tn):
    m_pad, k_pad = patches.shape
    n_pad = wmat.shape[1]
    mt, nt, kt = m_pad // tm, n_pad // tn, k_pad // tk

    flops = 2 * m_pad * k_pad * n_pad
    bytes_accessed = (patches.size * 2 + wmat.size * 2
                      + m_pad * n_pad * 2 + mt * 2 * n_pad * 4)

    return pl.pallas_call(
        _matmul_stats_kernel,
        out_shape=(jax.ShapeDtypeStruct((m_pad, n_pad), jnp.bfloat16),
                   jax.ShapeDtypeStruct((mt, 2, n_pad), jnp.float32)),
        grid=(mt, nt, kt),
        in_specs=[pl.BlockSpec((tm, tk), _idx_lhs),
                  pl.BlockSpec((tk, tn), _idx_rhs)],
        out_specs=(pl.BlockSpec((tm, tn), _idx_out3),
                   pl.BlockSpec((1, 2, tn), _idx_stats)),
        scratch_shapes=[pltpu.VMEM((tm, tn), jnp.float32)],
        compiler_params=pltpu.CompilerParams(
            dimension_semantics=("parallel", "parallel", "arbitrary"),
            vmem_limit_bytes=_VMEM_LIMIT),
        cost_estimate=pl.CostEstimate(flops=flops, transcendentals=0,
                                      bytes_accessed=int(bytes_accessed)),
    )(patches, wmat)


def _bn_lrelu_apply(conv_out, scale, shift, residual, tm, tn):
    m_pad, n_pad = conv_out.shape
    mt, nt = m_pad // tm, n_pad // tn

    tile_spec = pl.BlockSpec((tm, tn), _idx_tile)
    vec_spec = pl.BlockSpec((1, tn), _idx_vec)

    if residual is None:
        kernel = _bn_lrelu_kernel
        in_specs = [tile_spec, vec_spec, vec_spec]
        args = (conv_out, scale, shift)
    else:
        kernel = _bn_lrelu_add_kernel
        in_specs = [tile_spec, vec_spec, vec_spec, tile_spec]
        args = (conv_out, scale, shift, residual)

    bytes_accessed = int(sum(int(a.size) * a.dtype.itemsize for a in args)
                         + m_pad * n_pad * 2)

    return pl.pallas_call(
        kernel,
        out_shape=jax.ShapeDtypeStruct((m_pad, n_pad), jnp.bfloat16),
        grid=(mt, nt),
        in_specs=in_specs,
        out_specs=tile_spec,
        compiler_params=pltpu.CompilerParams(
            dimension_semantics=("parallel", "parallel"),
            vmem_limit_bytes=_VMEM_LIMIT),
        cost_estimate=pl.CostEstimate(flops=5 * m_pad * n_pad, transcendentals=0,
                                      bytes_accessed=bytes_accessed),
    )(*args)


# ------------------------------ JAX glue code ------------------------------ #

def _pick_tn(n_pad):
    for tn in (512, 256, 128):
        if n_pad % tn == 0:
            return tn
    return 128


def _pick_tk(k_pad):
    kb = k_pad // 128
    for mult in (4, 3, 2, 1):
        if kb % mult == 0:
            return 128 * mult
    return 128


def _choose_m_tiling(m, nt):
    """Pad M and pick the row tile; ensure >=2 parallel grid blocks (v7x)."""
    m8 = _round_up(m, 8)
    if m8 >= _TM:
        m_pad, tm = _round_up(m, _TM), _TM
    else:
        m_pad, tm = m8, m8
    if nt * (m_pad // tm) < 2 and m8 >= 16:
        tm = _round_up(tm // 2, 8)
        m_pad = _round_up(m, tm)
        if m_pad // tm < 2:
            m_pad = 2 * tm
    return m_pad, tm


def _im2col(x_nhwc, ks, stride):
    """(N*Ho*Wo, ks*ks*C) bf16 patches.  1x1/stride-1 convs are a free reshape."""
    n, h, w, c = x_nhwc.shape
    if ks == 1 and stride == 1:
        return x_nhwc.reshape(n * h * w, c), h, w
    pad = ks // 2
    xp = jnp.pad(x_nhwc, ((0, 0), (pad, pad), (pad, pad), (0, 0)))
    ho = (h + 2 * pad - ks) // stride + 1
    wo = (w + 2 * pad - ks) // stride + 1
    cols = []
    for ky in range(ks):
        for kx in range(ks):
            cols.append(
                xp[:,
                   ky:ky + stride * (ho - 1) + 1:stride,
                   kx:kx + stride * (wo - 1) + 1:stride,
                   :]
            )
    # (N, Ho, Wo, ks*ks, C) -> (M, ks*ks*C); tap-major / channel-minor ordering
    # matches the weight packing below.
    patches = jnp.stack(cols, axis=3).reshape(n * ho * wo, ks * ks * c)
    return patches, ho, wo


def apply_conv_bn_lrelu(x_nhwc, params, residual=None):
    n = x_nhwc.shape[0]
    ks, stride = params["ks"], params["stride"]
    cout_pad = params["cout_pad"]
    k_pad, n_pad = params["w"].shape

    patches, ho, wo = _im2col(x_nhwc, ks, stride)
    m = n * ho * wo
    k_cols = patches.shape[1]

    tn = _pick_tn(n_pad)
    m_pad, tm = _choose_m_tiling(m, n_pad // tn)
    tk = _pick_tk(k_pad)

    # Only pad when the activation is not already aligned (stem K, tiny M).
    if m_pad != m or k_cols != k_pad:
        patches = jnp.pad(patches, ((0, m_pad - m), (0, k_pad - k_cols)))

    conv_out, stats = _conv_matmul_stats(patches, params["w"], tm, tk, tn)

    # Global (training-mode) BatchNorm statistics over the real N*Ho*Wo rows.
    sums = jnp.sum(stats, axis=0)                       # (2, n_pad)
    mean = sums[0] / m
    var = jnp.maximum(sums[1] / m - mean * mean, 0.0)   # biased variance
    scale = params["gamma"] * jax.lax.rsqrt(var + BN_EPS)
    shift = params["beta"] - mean * scale

    res_flat = None
    if residual is not None:
        res_flat = residual.reshape(m, cout_pad)
        if m_pad != m:
            res_flat = jnp.pad(res_flat, ((0, m_pad - m), (0, 0)))

    out = _bn_lrelu_apply(conv_out, scale[None, :], shift[None, :],
                          res_flat, tm, tn)
    if m_pad != m:
        out = out[:m]
    return out.reshape(n, ho, wo, cout_pad)


def apply_res_layer(x_nhwc, conv1_params, conv2_params):
    h = apply_conv_bn_lrelu(x_nhwc, conv1_params)                 # 1x1, C -> C/2
    return apply_conv_bn_lrelu(h, conv2_params, residual=x_nhwc)  # 3x3, + skip


def darknet_forward(x_nchw, stem_params, stage_params):
    # NCHW (PyTorch convention) -> NHWC bf16 internal layout.
    x = jnp.transpose(x_nchw, (0, 2, 3, 1)).astype(jnp.bfloat16)

    outputs = []
    x = apply_conv_bn_lrelu(x, stem_params)
    outputs.append((x, stem_params["cout"]))
    for stage in stage_params:
        x = apply_conv_bn_lrelu(x, stage["down"])      # stride-2 downsample
        for conv1, conv2 in stage["blocks"]:
            x = apply_res_layer(x, conv1, conv2)
        outputs.append((x, stage["down"]["cout"]))

    def to_nchw(t, cout):
        return jnp.transpose(t[..., :cout], (0, 3, 1, 2)).astype(jnp.float32)

    # (dark3, dark4, dark5), matching the PyTorch module.
    return (to_nchw(*outputs[-3]), to_nchw(*outputs[-2]), to_nchw(*outputs[-1]))


# --------------------------- parameter construction ------------------------ #

def _init_conv_bn(key, cin, cout, ks, stride, cin_pad=None):
    """Conv2d(bias=False) + BatchNorm2d defaults, packed for the Pallas matmul.

    Weights carry the zero-padding: input channels padded to `cin_pad`
    (= producer's padded channel count) and output channels to a multiple of
    128, so activations can stay channel-padded between layers.
    """
    if cin_pad is None:
        cin_pad = _round_up(cin, 128)
    fan_in = cin * ks * ks
    bound = 1.0 / np.sqrt(fan_in)   # Conv2d kaiming_uniform(a=sqrt(5)) default
    w_oihw = jax.random.uniform(key, (cout, cin, ks, ks), jnp.float32,
                                minval=-bound, maxval=bound)
    cout_pad = _round_up(cout, 128)
    # (Cout,Cin,kh,kw) -> (kh,kw,Cin,Cout), zero-pad Cin/Cout, flatten K.
    w = jnp.transpose(w_oihw, (2, 3, 1, 0))
    w = jnp.pad(w, ((0, 0), (0, 0), (0, cin_pad - cin), (0, cout_pad - cout)))
    k_real = ks * ks * cin_pad
    k_pad = _round_up(k_real, 128)           # dense MXU columns (stem only)
    wmat = w.reshape(k_real, cout_pad)
    if k_pad != k_real:
        wmat = jnp.pad(wmat, ((0, k_pad - k_real), (0, 0)))
    wmat = wmat.astype(jnp.bfloat16)
    gamma = jnp.zeros((cout_pad,), jnp.float32).at[:cout].set(1.0)  # BN weight
    beta = jnp.zeros((cout_pad,), jnp.float32)                      # BN bias
    return {"w": wmat, "gamma": gamma, "beta": beta,
            "ks": ks, "stride": stride,
            "cin": cin, "cin_pad": cin_pad, "cout": cout, "cout_pad": cout_pad}


def build_darknet_params(key, ch_in=3, nf=32):
    num_blocks = [1, 2, 8, 8, 4]
    n_convs = 1 + len(num_blocks) + 2 * sum(num_blocks)
    keys = iter(jax.random.split(key, n_convs))

    # Stem keeps the raw (unpadded) input channels; its K is padded instead.
    stem = _init_conv_bn(next(keys), ch_in, nf, ks=3, stride=1, cin_pad=ch_in)
    stages = []
    for nb in num_blocks:
        stage = {"down": _init_conv_bn(next(keys), nf, nf * 2, ks=3, stride=2),
                 "blocks": []}
        for _ in range(nb):
            conv1 = _init_conv_bn(next(keys), nf * 2, nf, ks=1, stride=1)
            conv2 = _init_conv_bn(next(keys), nf, nf * 2, ks=3, stride=1)
            stage["blocks"].append((conv1, conv2))
        stages.append(stage)
        nf *= 2
    return stem, stages


# ----------------------------------- main ----------------------------------- #

if __name__ == "__main__":
    key = jax.random.PRNGKey(0)
    pkey, xkey = jax.random.split(key)

    # Small shapes: batch=2, ch_in=3, 32x32 input, stem filters nf=8.
    N, CH_IN, H, W, NF = 2, 3, 32, 32, 8
    stem_params, stage_params = build_darknet_params(pkey, ch_in=CH_IN, nf=NF)
    x = jax.random.normal(xkey, (N, CH_IN, H, W), dtype=jnp.float32)

    d3, d4, d5 = darknet_forward(x, stem_params, stage_params)
    jax.block_until_ready((d3, d4, d5))

    assert d3.shape == (N, NF * 8, H // 8, W // 8), d3.shape
    assert d4.shape == (N, NF * 16, H // 16, W // 16), d4.shape
    assert d5.shape == (N, NF * 32, H // 32, W // 32), d5.shape
    assert bool(jnp.isfinite(d3).all() & jnp.isfinite(d4).all()
                & jnp.isfinite(d5).all())

    print("KERNEL_OK")
</pallas_src>

<mosaic_0001>
module attributes {stable_mosaic.version = 11 : i64} {
  func.func @_matmul_stats_kernel(%arg0: i32, %arg1: i32, %arg2: i32, %arg3: memref<512x128xbf16, #tpu.memory_space<vmem>>, %arg4: memref<128x128xbf16, #tpu.memory_space<vmem>>, %arg5: memref<512x128xbf16, #tpu.memory_space<vmem>>, %arg6: memref<1x2x128xf32, #tpu.memory_space<vmem>>, %arg7: memref<512x128xf32, #tpu.memory_space<vmem>>) attributes {dimension_semantics = [#tpu.dimension_semantics<parallel>, #tpu.dimension_semantics<parallel>, #tpu.dimension_semantics<arbitrary>], iteration_bounds = array<i64: 4, 1, 1>, scalar_prefetch = 0 : i64, scratch_operands = 1 : i64, tpu.core_type = #tpu.core_type<tc>, window_params = [{transform_indices = @transform_0, window_bounds = array<i64: 512, 128>}, {transform_indices = @transform_1, window_bounds = array<i64: 128, 128>}, {transform_indices = @transform_2, window_bounds = array<i64: 512, 128>}, {transform_indices = @transform_3, window_bounds = array<i64: 1, 2, 128>}]} {
    %c0_i32 = arith.constant 0 : i32
    %0 = arith.cmpi eq, %arg2, %c0_i32 : i32
    %1 = arith.extui %0 : i1 to i32
    %c0_i32_0 = arith.constant 0 : i32
    %2 = arith.cmpi ne, %1, %c0_i32_0 : i32
    scf.if %2 {
      %cst_10 = arith.constant 0.000000e+00 : f32
      %12 = vector.broadcast %cst_10 : f32 to vector<512x128xf32>
      %c0_11 = arith.constant 0 : index
      %c0_12 = arith.constant 0 : index
      %13 = vector.load %arg7[%c0_11, %c0_12] : memref<512x128xf32, #tpu.memory_space<vmem>>, vector<512x128xf32>
      tpu.vector_store %arg7[%c0_11, %c0_12], %12 {strides = array<i32>} : memref<512x128xf32, #tpu.memory_space<vmem>>, vector<512x128xf32>,
    } else {
    }
    %c0 = arith.constant 0 : index
    %c0_1 = arith.constant 0 : index
    %3 = vector.load %arg7[%c0, %c0_1] : memref<512x128xf32, #tpu.memory_space<vmem>>, vector<512x128xf32>
    %c0_2 = arith.constant 0 : index
    %c0_3 = arith.constant 0 : index
    %4 = vector.load %arg3[%c0_2, %c0_3] : memref<512x128xbf16, #tpu.memory_space<vmem>>, vector<512x128xbf16>
    %c0_4 = arith.constant 0 : index
    %c0_5 = arith.constant 0 : index
    %5 = vector.load %arg4[%c0_4, %c0_5] : memref<128x128xbf16, #tpu.memory_space<vmem>>, vector<128x128xbf16>
    %cst = arith.constant dense<0.000000e+00> : vector<512x128xf32>
    %6 = tpu.matmul %4, %5, %cst {dimension_numbers = #tpu.dot_dimension_numbers<[1], [0], [0], [1], [0, 0, 1, 1], [], []>} : vector<512x128xbf16>, vector<128x128xbf16>, vector<512x128xf32> -> vector<512x128xf32>
    %7 = arith.addf %3, %6 : vector<512x128xf32>
    %c0_6 = arith.constant 0 : index
    %c0_7 = arith.constant 0 : index
    %8 = vector.load %arg7[%c0_6, %c0_7] : memref<512x128xf32, #tpu.memory_space<vmem>>, vector<512x128xf32>
    tpu.vector_store %arg7[%c0_6, %c0_7], %7 {strides = array<i32>} : memref<512x128xf32, #tpu.memory_space<vmem>>, vector<512x128xf32>,
    %c0_i32_8 = arith.constant 0 : i32
    %9 = arith.cmpi eq, %arg2, %c0_i32_8 : i32
    %10 = arith.extui %9 : i1 to i32
    %c0_i32_9 = arith.constant 0 : i32
    %11 = arith.cmpi ne, %10, %c0_i32_9 : i32
    scf.if %11 {
      %c0_10 = arith.constant 0 : index
      %c0_11 = arith.constant 0 : index
      %12 = vector.load %arg7[%c0_10, %c0_11] : memref<512x128xf32, #tpu.memory_space<vmem>>, vector<512x128xf32>
      %13 = arith.truncf %12 : vector<512x128xf32> to vector<512x128xbf16>
      %c0_12 = arith.constant 0 : index
      %c0_13 = arith.constant 0 : index
      %14 = vector.load %arg5[%c0_12, %c0_13] : memref<512x128xbf16, #tpu.memory_space<vmem>>, vector<512x128xbf16>
      tpu.vector_store %arg5[%c0_12, %c0_13], %13 {strides = array<i32>} : memref<512x128xbf16, #tpu.memory_space<vmem>>, vector<512x128xbf16>,
      %cst_14 = arith.constant dense<0.000000e+00> : vector<128xf32>
      %15 = vector.multi_reduction <add>, %12, %cst_14 [0] : vector<512x128xf32> to vector<128xf32>
      %16 = vector.shape_cast %15 : vector<128xf32> to vector<1x128xf32>
      %17 = vector.shape_cast %16 : vector<1x128xf32> to vector<1x1x128xf32>
      %c0_15 = arith.constant 0 : index
      %c0_16 = arith.constant 0 : index
      %c0_17 = arith.constant 0 : index
      %18 = vector.load %arg6[%c0_15, %c0_16, %c0_17] : memref<1x2x128xf32, #tpu.memory_space<vmem>>, vector<1x1x128xf32>
      tpu.vector_store %arg6[%c0_15, %c0_16, %c0_17], %17 {strides = array<i32>} : memref<1x2x128xf32, #tpu.memory_space<vmem>>, vector<1x1x128xf32>,
      %19 = arith.mulf %12, %12 : vector<512x128xf32>
      %cst_18 = arith.constant dense<0.000000e+00> : vector<128xf32>
      %20 = vector.multi_reduction <add>, %19, %cst_18 [0] : vector<512x128xf32> to vector<128xf32>
      %21 = vector.shape_cast %20 : vector<128xf32> to vector<1x128xf32>
      %22 = vector.shape_cast %21 : vector<1x128xf32> to vector<1x1x128xf32>
      %c0_19 = arith.constant 0 : index
      %c1 = arith.constant 1 : index
      %c0_20 = arith.constant 0 : index
      %23 = vector.load %arg6[%c0_19, %c1, %c0_20] : memref<1x2x128xf32, #tpu.memory_space<vmem>>, vector<1x1x128xf32>
      tpu.vector_store %arg6[%c0_19, %c1, %c0_20], %22 {strides = array<i32>} : memref<1x2x128xf32, #tpu.memory_space<vmem>>, vector<1x1x128xf32>,
    } else {
    }
    return
  }
  func.func @transform_0(%arg0: i32, %arg1: i32, %arg2: i32) -> (i32, i32) {
    %c0_i32 = arith.constant 0 : i32
    return %arg0, %arg2 : i32, i32
  }
  func.func @transform_1(%arg0: i32, %arg1: i32, %arg2: i32) -> (i32, i32) {
    %c0_i32 = arith.constant 0 : i32
    return %arg2, %arg1 : i32, i32
  }
  func.func @transform_2(%arg0: i32, %arg1: i32, %arg2: i32) -> (i32, i32) {
    %c0_i32 = arith.constant 0 : i32
    return %arg0, %arg1 : i32, i32
  }
  func.func @transform_3(%arg0: i32, %arg1: i32, %arg2: i32) -> (i32, i32, i32) {
    %c0_i32 = arith.constant 0 : i32
    %c0_i32_0 = arith.constant 0 : i32
    return %arg0, %c0_i32, %arg1 : i32, i32, i32
  }
}

</mosaic_0001>

<llo_original>
// kernel: tpu_custom_call.1
$region0: #{tpu_custom_call.1}
  #allocation0 [shape = 'u32[]', space=smem, size = 0x4, offset = 0x4, fixed_abs, tag = 'smem constant byte address 0x4 - core index']
  #allocation1 [shape = 'u32[144,128]{1,0:T(1,128)}', space=vmem, size = 0x12000, scoped, tag = 'internal scratch']
  #allocation2 [shape = 'f32[512,128]{1,0:T(8,128)}', space=vmem, size = 0x40000, scoped, tag = 'scratch operand']
  %s0 = inlined_call_operand.hbm [shape: bf16[2048,128], index: 0, kind: input, shape index: {}]
  %s1 = inlined_call_operand.hbm [shape: bf16[128,128], index: 1, kind: input, shape index: {}]
  %s2 = inlined_call_operand.hbm [shape: bf16[2048,128], index: 2, kind: output, shape index: {0}]
  %s3 = inlined_call_operand.hbm [shape: f32[4,2,128], index: 3, kind: output, shape index: {1}]
  %4 = xla_tuple %s2, %s3
  %s5 = sld [smem:[#allocation0]]
  $region65: #{tpu_custom_call.1} parent=0
    _
  %s7 = ssub.s32 1, %s5
  %s8 = scalar_select 0, %s7, %s5
  $region1: #{tpu_custom_call.1} parent=0
    #allocation3 [shape = 'u8[262144]{0}', space=vmem, size = 0x40000, scoped, tag = 'input window, operand 0']
    #allocation4 [shape = 's32[2]{0}', space=sflag, size = 0x8, scoped, tag = 'scoped memory for tpu_custom_call.1']
    #allocation5 [shape = 's32[2]{0}', space=sflag, size = 0x8, scoped, tag = 'scoped memory for tpu_custom_call.1']
    #allocation6 [shape = 'u8[32768]{0}', space=vmem, size = 0x8000, scoped, tag = 'input window, operand 1, single buffered']
    #allocation7 [shape = 's32[1]{0}', space=sflag, size = 0x4, scoped, tag = 'scoped memory for tpu_custom_call.1']
    #allocation8 [shape = 'u8[262144]{0}', space=vmem, size = 0x40000, scoped, tag = 'output window, operand 0']
    #allocation9 [shape = 'u8[2048]{0}', space=vmem, size = 0x800, scoped, tag = 'output window, operand 1']
    #allocation10 [shape = 's32[2]{0}', space=sflag, size = 0x8, scoped, tag = 'scoped memory for tpu_custom_call.1']
    %9 = vsyncpa [#allocation4], 0
    %s10 = scalar_lea.sflag [#allocation4], 1
    %11 = vsyncpa %s10, 0
    %12 = vsyncpa [#allocation7], 0
    %13 = vsyncpa [#allocation5], 0
    %s14 = scalar_lea.sflag [#allocation5], 1
    %15 = vsyncpa %s14, 0
    %16 = vsyncpa [#allocation10], 0
    %s17 = scalar_lea.sflag [#allocation10], 1
    %18 = vsyncpa %s17, 0
    loop: start=0, step=1, limit=6
    $region2: #{tpu_custom_call.1} parent=1 // loop_pre_header
      _
    $region3: #{tpu_custom_call.1} parent=1 // loop_header
      %s20 = sphi 0, %s24
      %p21 = scmp.ge.s32.totalorder %s20, 6
      %s27 = sphi 0, %s46
      %s28 = sphi 0, %s42
      %s29 = sphi 0, %s38
      %s30 = sphi 0, %s27
      %s31 = sphi 0, %s28
      %s32 = sphi 0, %s29
      %s33 = sphi 0, %s30
      %s34 = sphi 0, %s31
      %s35 = sphi 0, %s32
      %s51 = sphi 0, %s53
      %s54 = sphi 0, %s51
      %s55 = sphi 0, %s54
      %s71 = sphi 0, %s55
      %s79 = sphi 0, %s81
      %s82 = sphi 0, %s79
      %s83 = sphi 0, %s82
      %s99 = sphi 0, %s83
      %s107 = sphi 0, %s109
      %s110 = sphi 0, %s107
      %s111 = sphi 0, %s110
      %s127 = sphi 0, %s111
      %s135 = sphi 0, %s137
      %s138 = sphi 0, %s135
      %s139 = sphi 0, %s138
      %s155 = sphi 0, %s139
    $region4: #{tpu_custom_call.1} parent=1 // loop_header_branch
      %23 = sbr.rel (%p21) target = $region8
    $region5: #{tpu_custom_call.1} parent=1 // loop_body
      %s25 = ssub.s32 %s20, 1
      %s26 = ssub.s32 %s20, 2
      %s36 = sadd.s32 1, %s29
      %p37 = scmp.ge.s32.totalorder %s36, 1
      %s38 = scalar_select %p37, 0, %s36
      %s39 = sadd.s32 1, %s28
      %s40 = scalar_select %p37, %s39, %s28
      %p41 = scmp.ge.s32.totalorder %s40, 1
      %s42 = scalar_select %p41, 0, %s40
      %s43 = sadd.s32 1, %s27
      %s44 = scalar_select %p41, %s43, %s27
      %p45 = scmp.ge.s32.totalorder %s44, 4
      %s46 = scalar_select %p45, 0, %s44
      %s47 = ssub.s32 %s27, %s46
      %s48 = ssub.s32 %s29, %s38
      %s49 = sor.u32 %s47, %s48
      %p50 = scmp.eq.s32.totalorder %s49, 0
      %s52 = sadd.s32 %s51, 1
      %s53 = scalar_select %p50, %s51, %s52
      %p56 = pneg %p50
      %p57 = scmp.eq.s32.totalorder %s20, 3
      %p58 = por %p56, %p57
      %p59 = scmp.ne.s32.totalorder %s51, %s54
      %p60 = scmp.eq.s32.totalorder %s20, 0
      %p61 = por %p59, %p60
      %p62 = scmp.ne.s32.totalorder %s51, %s54
      %p63 = scmp.eq.s32.totalorder %s25, 3
      %p64 = por %p62, %p63
      %p65 = scmp.ne.s32.totalorder %s54, %s55
      %p66 = scmp.eq.s32.totalorder %s25, 0
      %p67 = por %p65, %p66
      %p68 = scmp.ne.s32.totalorder %s54, %s55
      %p69 = scmp.eq.s32.totalorder %s26, 3
      %p70 = por %p68, %p69
      %p72 = scmp.ne.s32.totalorder %s55, %s71
      %p73 = scmp.eq.s32.totalorder %s26, 0
      %p74 = por %p72, %p73
      %s75 = ssub.s32 %s29, %s38
      %s76 = ssub.s32 %s28, %s42
      %s77 = sor.u32 %s75, %s76
      %p78 = scmp.eq.s32.totalorder %s77, 0
      %s80 = sadd.s32 %s79, 1
      %s81 = scalar_select %p78, %s79, %s80
      %p84 = pneg %p78
      %p85 = scmp.eq.s32.totalorder %s20, 3
      %p86 = por %p84, %p85
      %p87 = scmp.ne.s32.totalorder %s79, %s82
      %p88 = scmp.eq.s32.totalorder %s20, 0
      %p89 = por %p87, %p88
      %p90 = scmp.ne.s32.totalorder %s79, %s82
      %p91 = scmp.eq.s32.totalorder %s25, 3
      %p92 = por %p90, %p91
      %p93 = scmp.ne.s32.totalorder %s82, %s83
      %p94 = scmp.eq.s32.totalorder %s25, 0
      %p95 = por %p93, %p94
      %p96 = scmp.ne.s32.totalorder %s82, %s83
      %p97 = scmp.eq.s32.totalorder %s26, 3
      %p98 = por %p96, %p97
      %p100 = scmp.ne.s32.totalorder %s83, %s99
      %p101 = scmp.eq.s32.totalorder %s26, 0
      %p102 = por %p100, %p101
      %s103 = ssub.s32 %s27, %s46
      %s104 = ssub.s32 %s28, %s42
      %s105 = sor.u32 %s103, %s104
      %p106 = scmp.eq.s32.totalorder %s105, 0
      %s108 = sadd.s32 %s107, 1
      %s109 = scalar_select %p106, %s107, %s108
      %p112 = pneg %p106
      %p113 = scmp.eq.s32.totalorder %s20, 3
      %p114 = por %p112, %p113
      %p115 = scmp.ne.s32.totalorder %s107, %s110
      %p116 = scmp.eq.s32.totalorder %s20, 0
      %p117 = por %p115, %p116
      %p118 = scmp.ne.s32.totalorder %s107, %s110
      %p119 = scmp.eq.s32.totalorder %s25, 3
      %p120 = por %p118, %p119
      %p121 = scmp.ne.s32.totalorder %s110, %s111
      %p122 = scmp.eq.s32.totalorder %s25, 0
      %p123 = por %p121, %p122
      %p124 = scmp.ne.s32.totalorder %s110, %s111
      %p125 = scmp.eq.s32.totalorder %s26, 3
      %p126 = por %p124, %p125
      %p128 = scmp.ne.s32.totalorder %s111, %s127
      %p129 = scmp.eq.s32.totalorder %s26, 0
      %p130 = por %p128, %p129
      %s131 = ssub.s32 %s27, %s46
      %s132 = ssub.s32 %s28, %s42
      %s133 = sor.u32 %s131, %s132
      %p134 = scmp.eq.s32.totalorder %s133, 0
      %s136 = sadd.s32 %s135, 1
      %s137 = scalar_select %p134, %s135, %s136
      %p140 = pneg %p134
      %p141 = scmp.eq.s32.totalorder %s20, 3
      %p142 = por %p140, %p141
      %p143 = scmp.ne.s32.totalorder %s135, %s138
      %p144 = scmp.eq.s32.totalorder %s20, 0
      %p145 = por %p143, %p144
      %p146 = scmp.ne.s32.totalorder %s135, %s138
      %p147 = scmp.eq.s32.totalorder %s25, 3
      %p148 = por %p146, %p147
      %p149 = scmp.ne.s32.totalorder %s138, %s139
      %p150 = scmp.eq.s32.totalorder %s25, 0
      %p151 = por %p149, %p150
      %p152 = scmp.ne.s32.totalorder %s138, %s139
      %p153 = scmp.eq.s32.totalorder %s26, 3
      %p154 = por %p152, %p153
      %p156 = scmp.ne.s32.totalorder %s139, %s155
      %p157 = scmp.eq.s32.totalorder %s26, 0
      %p158 = por %p156, %p157
      %p159 = scmp.le.s32.totalorder 1, %s20
      %p160 = scmp.lt.s32.totalorder %s20, 5
      %p161 = pnand %p159, %p160
      %p162 = pneg %p161
      // Predicated region
      $region9: #{tpu_custom_call.1} parent=5 // pred_check
        _
      $region10: #{tpu_custom_call.1} parent=5 // pred_check_branch
        %164 = sbr.rel (%p161) target = $region12
      $region11: #{tpu_custom_call.1} parent=5 // pred_region
        %s165 = ssub.s32 %s20, 1
        // Predicated region
        $region13: #{tpu_custom_call.1} parent=11 // pred_check
          %p166 = pneg %p95
        $region14: #{tpu_custom_call.1} parent=11 // pred_check_branch
          %168 = sbr.rel (%p166) target = $region16
        $region15: #{tpu_custom_call.1} parent=11 // pred_region
          %s169 = smul.u32 16, %s32
          %s171 = ssub.s32 1024, 1024
          %172 = vsyncadd [#allocation7], %s171
          %s173 = sadd.s32 %s31, %s169
          %s174 = smul.addr %s173, 64
          %s175 = scalar_lea.hbm %s1, %s174
          %s176 = sshll.u32 [#allocation6], 4
          %s177 = int_to_ptr.vmem [resolvable:$true] %s176
          %182 = dma.hbm_to_vmem [thread:$0]  %s175, 1024, %s177, [#allocation7], 64, 64, 4
        $region16: #{tpu_custom_call.1} parent=11 // pred_fallthru
          _
      $region12: #{tpu_custom_call.1} parent=5 // pred_fallthru
        _
      %p183 = scmp.lt.s32.totalorder %s20, 4
      // Predicated region
      $region17: #{tpu_custom_call.1} parent=5 // pred_check
        %p184 = pneg %p183
      $region18: #{tpu_custom_call.1} parent=5 // pred_check_branch
        %186 = sbr.rel (%p184) target = $region20
      $region19: #{tpu_custom_call.1} parent=5 // pred_region
        // Predicated region
        $region21: #{tpu_custom_call.1} parent=19 // pred_check
          %p187 = pneg %p61
        $region22: #{tpu_custom_call.1} parent=19 // pred_check_branch
          %189 = sbr.rel (%p187) target = $region24
        $region23: #{tpu_custom_call.1} parent=19 // pred_region
          %s190 = sand.u32 %s51, 1
          %s191 = scalar_lea.sflag [#allocation4], %s190
          %s192 = sand.u32 %s51, 1
          %s193 = smul.addr %s192, 256
          %s194 = scalar_lea.vmem [#allocation3], %s193
          %s195 = smul.u32 64, %s27
          %s197 = ssub.s32 4096, 4096
          %198 = vsyncadd %s191, %s197
          %s199 = sadd.s32 %s29, %s195
          %s200 = smul.addr %s199, 64
          %s201 = scalar_lea.hbm %s0, %s200
          %s202 = sshll.u32 %s194, 4
          %s203 = int_to_ptr.vmem [resolvable:$true] %s202
          %208 = dma.hbm_to_vmem [thread:$0]  %s201, 4096, %s203, %s191, 64, 64, 4
        $region24: #{tpu_custom_call.1} parent=19 // pred_fallthru
          _
      $region20: #{tpu_custom_call.1} parent=5 // pred_fallthru
        _
      %p209 = scmp.le.s32.totalorder 1, %s20
      %p210 = scmp.lt.s32.totalorder %s20, 5
      %p211 = pnand %p209, %p210
      %p212 = pneg %p211
      // Predicated region
      $region25: #{tpu_custom_call.1} parent=5 // pred_check
        _
      $region26: #{tpu_custom_call.1} parent=5 // pred_check_branch
        %214 = sbr.rel (%p211) target = $region28
      $region27: #{tpu_custom_call.1} parent=5 // pred_region
        %s215 = ssub.s32 %s20, 1
        %s216 = sand.u32 %s54, 1
        %s217 = scalar_lea.sflag [#allocation4], %s216
        %s218 = sand.u32 %s54, 1
        %s219 = smul.addr %s218, 256
        %s220 = scalar_lea.vmem [#allocation3], %s219
        // Predicated region
        $region29: #{tpu_custom_call.1} parent=27 // pred_check
          %p221 = pneg %p67
        $region30: #{tpu_custom_call.1} parent=27 // pred_check_branch
          %223 = sbr.rel (%p221) target = $region32
        $region31: #{tpu_custom_call.1} parent=27 // pred_region
          %224 = dma.done %s217, 4096
        $region32: #{tpu_custom_call.1} parent=27 // pred_fallthru
          _
        // Predicated region
        $region33: #{tpu_custom_call.1} parent=27 // pred_check
          %p225 = pneg %p95
        $region34: #{tpu_custom_call.1} parent=27 // pred_check_branch
          %227 = sbr.rel (%p225) target = $region36
        $region35: #{tpu_custom_call.1} parent=27 // pred_region
          %228 = dma.done [#allocation7], 1024
        $region36: #{tpu_custom_call.1} parent=27 // pred_fallthru
          _
        %s229 = sand.u32 %s54, 1
        %s230 = scalar_lea.sflag [#allocation4], %s229
        %s231 = sand.u32 %s54, 1
        %s232 = smul.addr %s231, 256
        %s233 = scalar_lea.vmem [#allocation3], %s232
        %p234 = pneg %p67
        %p235 = pneg %p64
        %p236 = pneg %p95
        %p237 = pneg %p92
        %p238 = pneg %p123
        %p239 = pneg %p120
        %s240 = sand.u32 %s110, 1
        %s241 = scalar_lea.sflag [#allocation5], %s240
        %s242 = sand.u32 %s110, 1
        %s243 = smul.addr %s242, 256
        %s244 = scalar_lea.vmem [#allocation8], %s243
        %p245 = pneg %p151
        %p246 = pneg %p148
        %s247 = sand.u32 %s138, 1
        %s248 = scalar_lea.sflag [#allocation10], %s247
        %s249 = sand.u32 %s138, 1
        %s250 = smul.addr %s249, 2
        %s251 = scalar_lea.vmem [#allocation9], %s250
        %s252 = smul.u32 64, %s30
        %s253 = smul.u32 16, %s32
        %s254 = smul.u32 64, %s30
        %p256 = scmp.eq.s32.totalorder %s32, 0
        // Predicated region
        $region37: #{tpu_custom_call.1} parent=27 // pred_check
          %p257 = pneg %p256
        $region38: #{tpu_custom_call.1} parent=27 // pred_check_branch
          %259 = sbr.rel (%p257) target = $region40
        $region39: #{tpu_custom_call.1} parent=27 // pred_region
          %260 = vst [vmem:[#allocation2] sm:$0xff] 0.0
          %261 = vst [vmem:[#allocation2 + $0x8] sm:$0xff] 0.0
          %262 = vst [vmem:[#allocation2 + $0x10] sm:$0xff] 0.0
          %263 = vst [vmem:[#allocation2 + $0x18] sm:$0xff] 0.0
          %264 = vst [vmem:[#allocation2 + $0x20] sm:$0xff] 0.0
          %265 = vst [vmem:[#allocation2 + $0x28] sm:$0xff] 0.0
          %266 = vst [vmem:[#allocation2 + $0x30] sm:$0xff] 0.0
          %267 = vst [vmem:[#allocation2 + $0x38] sm:$0xff] 0.0
          %268 = vst [vmem:[#allocation2 + $0x40] sm:$0xff] 0.0
          %269 = vst [vmem:[#allocation2 + $0x48] sm:$0xff] 0.0
          %270 = vst [vmem:[#allocation2 + $0x50] sm:$0xff] 0.0
          %271 = vst [vmem:[#allocation2 + $0x58] sm:$0xff] 0.0
          %272 = vst [vmem:[#allocation2 + $0x60] sm:$0xff] 0.0
          %273 = vst [vmem:[#allocation2 + $0x68] sm:$0xff] 0.0
          %274 = vst [vmem:[#allocation2 + $0x70] sm:$0xff] 0.0
          %275 = vst [vmem:[#allocation2 + $0x78] sm:$0xff] 0.0
          %276 = vst [vmem:[#allocation2 + $0x80] sm:$0xff] 0.0
          %277 = vst [vmem:[#allocation2 + $0x88] sm:$0xff] 0.0
          %278 = vst [vmem:[#allocation2 + $0x90] sm:$0xff] 0.0
          %279 = vst [vmem:[#allocation2 + $0x98] sm:$0xff] 0.0
          %280 = vst [vmem:[#allocation2 + $0xa0] sm:$0xff] 0.0
          %281 = vst [vmem:[#allocation2 + $0xa8] sm:$0xff] 0.0
          %282 = vst [vmem:[#allocation2 + $0xb0] sm:$0xff] 0.0
          %283 = vst [vmem:[#allocation2 + $0xb8] sm:$0xff] 0.0
          %284 = vst [vmem:[#allocation2 + $0xc0] sm:$0xff] 0.0
          %285 = vst [vmem:[#allocation2 + $0xc8] sm:$0xff] 0.0
          %286 = vst [vmem:[#allocation2 + $0xd0] sm:$0xff] 0.0
          %287 = vst [vmem:[#allocation2 + $0xd8] sm:$0xff] 0.0
          %288 = vst [vmem:[#allocation2 + $0xe0] sm:$0xff] 0.0
          %289 = vst [vmem:[#allocation2 + $0xe8] sm:$0xff] 0.0
          %290 = vst [vmem:[#allocation2 + $0xf0] sm:$0xff] 0.0
          %291 = vst [vmem:[#allocation2 + $0xf8] sm:$0xff] 0.0
          %292 = vst [vmem:[#allocation2 + $0x100] sm:$0xff] 0.0
          %293 = vst [vmem:[#allocation2 + $0x108] sm:$0xff] 0.0
          %294 = vst [vmem:[#allocation2 + $0x110] sm:$0xff] 0.0
          %295 = vst [vmem:[#allocation2 + $0x118] sm:$0xff] 0.0
          %296 = vst [vmem:[#allocation2 + $0x120] sm:$0xff] 0.0
          %297 = vst [vmem:[#allocation2 + $0x128] sm:$0xff] 0.0
          %298 = vst [vmem:[#allocation2 + $0x130] sm:$0xff] 0.0
          %299 = vst [vmem:[#allocation2 + $0x138] sm:$0xff] 0.0
          %300 = vst [vmem:[#allocation2 + $0x140] sm:$0xff] 0.0
          %301 = vst [vmem:[#allocation2 + $0x148] sm:$0xff] 0.0
          %302 = vst [vmem:[#allocation2 + $0x150] sm:$0xff] 0.0
          %303 = vst [vmem:[#allocation2 + $0x158] sm:$0xff] 0.0
          %304 = vst [vmem:[#allocation2 + $0x160] sm:$0xff] 0.0
          %305 = vst [vmem:[#allocation2 + $0x168] sm:$0xff] 0.0
          %306 = vst [vmem:[#allocation2 + $0x170] sm:$0xff] 0.0
          %307 = vst [vmem:[#allocation2 + $0x178] sm:$0xff] 0.0
          %308 = vst [vmem:[#allocation2 + $0x180] sm:$0xff] 0.0
          %309 = vst [vmem:[#allocation2 + $0x188] sm:$0xff] 0.0
          %310 = vst [vmem:[#allocation2 + $0x190] sm:$0xff] 0.0
          %311 = vst [vmem:[#allocation2 + $0x198] sm:$0xff] 0.0
          %312 = vst [vmem:[#allocation2 + $0x1a0] sm:$0xff] 0.0
          %313 = vst [vmem:[#allocation2 + $0x1a8] sm:$0xff] 0.0
          %314 = vst [vmem:[#allocation2 + $0x1b0] sm:$0xff] 0.0
          %315 = vst [vmem:[#allocation2 + $0x1b8] sm:$0xff] 0.0
          %316 = vst [vmem:[#allocation2 + $0x1c0] sm:$0xff] 0.0
          %317 = vst [vmem:[#allocation2 + $0x1c8] sm:$0xff] 0.0
          %318 = vst [vmem:[#allocation2 + $0x1d0] sm:$0xff] 0.0
          %319 = vst [vmem:[#allocation2 + $0x1d8] sm:$0xff] 0.0
          %320 = vst [vmem:[#allocation2 + $0x1e0] sm:$0xff] 0.0
          %321 = vst [vmem:[#allocation2 + $0x1e8] sm:$0xff] 0.0
          %322 = vst [vmem:[#allocation2 + $0x1f0] sm:$0xff] 0.0
          %323 = vst [vmem:[#allocation2 + $0x1f8] sm:$0xff] 0.0
        $region40: #{tpu_custom_call.1} parent=27 // pred_fallthru
          _
        %v324 = vld [vmem:[#allocation2] sm:$0xff]
        %v325 = vld [vmem:[#allocation2 + $0x8] sm:$0xff]
        %v326 = vld [vmem:[#allocation2 + $0x10] sm:$0xff]
        %v327 = vld [vmem:[#allocation2 + $0x18] sm:$0xff]
        %v328 = vld [vmem:[#allocation2 + $0x20] sm:$0xff]
        %v329 = vld [vmem:[#allocation2 + $0x28] sm:$0xff]
        %v330 = vld [vmem:[#allocation2 + $0x30] sm:$0xff]
        %v331 = vld [vmem:[#allocation2 + $0x38] sm:$0xff]
        %v332 = vld [vmem:[#allocation2 + $0x40] sm:$0xff]
        %v333 = vld [vmem:[#allocation2 + $0x48] sm:$0xff]
        %v334 = vld [vmem:[#allocation2 + $0x50] sm:$0xff]
        %v335 = vld [vmem:[#allocation2 + $0x58] sm:$0xff]
        %v336 = vld [vmem:[#allocation2 + $0x60] sm:$0xff]
        %v337 = vld [vmem:[#allocation2 + $0x68] sm:$0xff]
        %v338 = vld [vmem:[#allocation2 + $0x70] sm:$0xff]
        %v339 = vld [vmem:[#allocation2 + $0x78] sm:$0xff]
        %v340 = vld [vmem:[#allocation2 + $0x80] sm:$0xff]
        %v341 = vld [vmem:[#allocation2 + $0x88] sm:$0xff]
        %v342 = vld [vmem:[#allocation2 + $0x90] sm:$0xff]
        %v343 = vld [vmem:[#allocation2 + $0x98] sm:$0xff]
        %v344 = vld [vmem:[#allocation2 + $0xa0] sm:$0xff]
        %v345 = vld [vmem:[#allocation2 + $0xa8] sm:$0xff]
        %v346 = vld [vmem:[#allocation2 + $0xb0] sm:$0xff]
        %v347 = vld [vmem:[#allocation2 + $0xb8] sm:$0xff]
        %v348 = vld [vmem:[#allocation2 + $0xc0] sm:$0xff]
        %v349 = vld [vmem:[#allocation2 + $0xc8] sm:$0xff]
        %v350 = vld [vmem:[#allocation2 + $0xd0] sm:$0xff]
        %v351 = vld [vmem:[#allocation2 + $0xd8] sm:$0xff]
        %v352 = vld [vmem:[#allocation2 + $0xe0] sm:$0xff]
        %v353 = vld [vmem:[#allocation2 + $0xe8] sm:$0xff]
        %v354 = vld [vmem:[#allocation2 + $0xf0] sm:$0xff]
        %v355 = vld [vmem:[#allocation2 + $0xf8] sm:$0xff]
        %v356 = vld [vmem:[#allocation2 + $0x100] sm:$0xff]
        %v357 = vld [vmem:[#allocation2 + $0x108] sm:$0xff]
        %v358 = vld [vmem:[#allocation2 + $0x110] sm:$0xff]
        %v359 = vld [vmem:[#allocation2 + $0x118] sm:$0xff]
        %v360 = vld [vmem:[#allocation2 + $0x120] sm:$0xff]
        %v361 = vld [vmem:[#allocation2 + $0x128] sm:$0xff]
        %v362 = vld [vmem:[#allocation2 + $0x130] sm:$0xff]
        %v363 = vld [vmem:[#allocation2 + $0x138] sm:$0xff]
        %v364 = vld [vmem:[#allocation2 + $0x140] sm:$0xff]
        %v365 = vld [vmem:[#allocation2 + $0x148] sm:$0xff]
        %v366 = vld [vmem:[#allocation2 + $0x150] sm:$0xff]
        %v367 = vld [vmem:[#allocation2 + $0x158] sm:$0xff]
        %v368 = vld [vmem:[#allocation2 + $0x160] sm:$0xff]
        %v369 = vld [vmem:[#allocation2 + $0x168] sm:$0xff]
        %v370 = vld [vmem:[#allocation2 + $0x170] sm:$0xff]
        %v371 = vld [vmem:[#allocation2 + $0x178] sm:$0xff]
        %v372 = vld [vmem:[#allocation2 + $0x180] sm:$0xff]
        %v373 = vld [vmem:[#allocation2 + $0x188] sm:$0xff]
        %v374 = vld [vmem:[#allocation2 + $0x190] sm:$0xff]
        %v375 = vld [vmem:[#allocation2 + $0x198] sm:$0xff]
        %v376 = vld [vmem:[#allocation2 + $0x1a0] sm:$0xff]
        %v377 = vld [vmem:[#allocation2 + $0x1a8] sm:$0xff]
        %v378 = vld [vmem:[#allocation2 + $0x1b0] sm:$0xff]
        %v379 = vld [vmem:[#allocation2 + $0x1b8] sm:$0xff]
        %v380 = vld [vmem:[#allocation2 + $0x1c0] sm:$0xff]
        %v381 = vld [vmem:[#allocation2 + $0x1c8] sm:$0xff]
        %v382 = vld [vmem:[#allocation2 + $0x1d0] sm:$0xff]
        %v383 = vld [vmem:[#allocation2 + $0x1d8] sm:$0xff]
        %v384 = vld [vmem:[#allocation2 + $0x1e0] sm:$0xff]
        %v385 = vld [vmem:[#allocation2 + $0x1e8] sm:$0xff]
        %v386 = vld [vmem:[#allocation2 + $0x1f0] sm:$0xff]
        %v387 = vld [vmem:[#allocation2 + $0x1f8] sm:$0xff]
        %v388 = vld [vmem:[%s220] sm:$0xf]
        %v389 = vld [vmem:[%s220 + $0x4] sm:$0xf]
        %v390 = vld [vmem:[%s220 + $0x8] sm:$0xf]
        %v391 = vld [vmem:[%s220 + $0xc] sm:$0xf]
        %v392 = vld [vmem:[%s220 + $0x10] sm:$0xf]
        %v393 = vld [vmem:[%s220 + $0x14] sm:$0xf]
        %v394 = vld [vmem:[%s220 + $0x18] sm:$0xf]
        %v395 = vld [vmem:[%s220 + $0x1c] sm:$0xf]
        %v396 = vld [vmem:[%s220 + $0x20] sm:$0xf]
        %v397 = vld [vmem:[%s220 + $0x24] sm:$0xf]
        %v398 = vld [vmem:[%s220 + $0x28] sm:$0xf]
        %v399 = vld [vmem:[%s220 + $0x2c] sm:$0xf]
        %v400 = vld [vmem:[%s220 + $0x30] sm:$0xf]
        %v401 = vld [vmem:[%s220 + $0x34] sm:$0xf]
        %v402 = vld [vmem:[%s220 + $0x38] sm:$0xf]
        %v403 = vld [vmem:[%s220 + $0x3c] sm:$0xf]
        %v404 = vld [vmem:[%s220 + $0x40] sm:$0xf]
        %v405 = vld [vmem:[%s220 + $0x44] sm:$0xf]
        %v406 = vld [vmem:[%s220 + $0x48] sm:$0xf]
        %v407 = vld [vmem:[%s220 + $0x4c] sm:$0xf]
        %v408 = vld [vmem:[%s220 + $0x50] sm:$0xf]
        %v409 = vld [vmem:[%s220 + $0x54] sm:$0xf]
        %v410 = vld [vmem:[%s220 + $0x58] sm:$0xf]
        %v411 = vld [vmem:[%s220 + $0x5c] sm:$0xf]
        %v412 = vld [vmem:[%s220 + $0x60] sm:$0xf]
        %v413 = vld [vmem:[%s220 + $0x64] sm:$0xf]
        %v414 = vld [vmem:[%s220 + $0x68] sm:$0xf]
        %v415 = vld [vmem:[%s220 + $0x6c] sm:$0xf]
        %v416 = vld [vmem:[%s220 + $0x70] sm:$0xf]
        %v417 = vld [vmem:[%s220 + $0x74] sm:$0xf]
        %v418 = vld [vmem:[%s220 + $0x78] sm:$0xf]
        %v419 = vld [vmem:[%s220 + $0x7c] sm:$0xf]
        %v420 = vld [vmem:[%s220 + $0x80] sm:$0xf]
        %v421 = vld [vmem:[%s220 + $0x84] sm:$0xf]
        %v422 = vld [vmem:[%s220 + $0x88] sm:$0xf]
        %v423 = vld [vmem:[%s220 + $0x8c] sm:$0xf]
        %v424 = vld [vmem:[%s220 + $0x90] sm:$0xf]
        %v425 = vld [vmem:[%s220 + $0x94] sm:$0xf]
        %v426 = vld [vmem:[%s220 + $0x98] sm:$0xf]
        %v427 = vld [vmem:[%s220 + $0x9c] sm:$0xf]
        %v428 = vld [vmem:[%s220 + $0xa0] sm:$0xf]
        %v429 = vld [vmem:[%s220 + $0xa4] sm:$0xf]
        %v430 = vld [vmem:[%s220 + $0xa8] sm:$0xf]
        %v431 = vld [vmem:[%s220 + $0xac] sm:$0xf]
        %v432 = vld [vmem:[%s220 + $0xb0] sm:$0xf]
        %v433 = vld [vmem:[%s220 + $0xb4] sm:$0xf]
        %v434 = vld [vmem:[%s220 + $0xb8] sm:$0xf]
        %v435 = vld [vmem:[%s220 + $0xbc] sm:$0xf]
        %v436 = vld [vmem:[%s220 + $0xc0] sm:$0xf]
        %v437 = vld [vmem:[%s220 + $0xc4] sm:$0xf]
        %v438 = vld [vmem:[%s220 + $0xc8] sm:$0xf]
        %v439 = vld [vmem:[%s220 + $0xcc] sm:$0xf]
        %v440 = vld [vmem:[%s220 + $0xd0] sm:$0xf]
        %v441 = vld [vmem:[%s220 + $0xd4] sm:$0xf]
        %v442 = vld [vmem:[%s220 + $0xd8] sm:$0xf]
        %v443 = vld [vmem:[%s220 + $0xdc] sm:$0xf]
        %v444 = vld [vmem:[%s220 + $0xe0] sm:$0xf]
        %v445 = vld [vmem:[%s220 + $0xe4] sm:$0xf]
        %v446 = vld [vmem:[%s220 + $0xe8] sm:$0xf]
        %v447 = vld [vmem:[%s220 + $0xec] sm:$0xf]
        %v448 = vld [vmem:[%s220 + $0xf0] sm:$0xf]
        %v449 = vld [vmem:[%s220 + $0xf4] sm:$0xf]
        %v450 = vld [vmem:[%s220 + $0xf8] sm:$0xf]
        %v451 = vld [vmem:[%s220 + $0xfc] sm:$0xf]
        %v452 = vld [vmem:[#allocation6] sm:$0xf]
        %v453 = vld [vmem:[#allocation6 + $0x4] sm:$0xf]
        %v454 = vld [vmem:[#allocation6 + $0x8] sm:$0xf]
        %v455 = vld [vmem:[#allocation6 + $0xc] sm:$0xf]
        %v456 = vld [vmem:[#allocation6 + $0x10] sm:$0xf]
        %v457 = vld [vmem:[#allocation6 + $0x14] sm:$0xf]
        %v458 = vld [vmem:[#allocation6 + $0x18] sm:$0xf]
        %v459 = vld [vmem:[#allocation6 + $0x1c] sm:$0xf]
        %v460 = vld [vmem:[#allocation6 + $0x20] sm:$0xf]
        %v461 = vld [vmem:[#allocation6 + $0x24] sm:$0xf]
        %v462 = vld [vmem:[#allocation6 + $0x28] sm:$0xf]
        %v463 = vld [vmem:[#allocation6 + $0x2c] sm:$0xf]
        %v464 = vld [vmem:[#allocation6 + $0x30] sm:$0xf]
        %v465 = vld [vmem:[#allocation6 + $0x34] sm:$0xf]
        %v466 = vld [vmem:[#allocation6 + $0x38] sm:$0xf]
        %v467 = vld [vmem:[#allocation6 + $0x3c] sm:$0xf]
        %v532 = vunpack.c.l.b16 %v388
        %v533 = vunpack.c.l.b16 %v389
        %v534 = vunpack.c.l.b16 %v390
        %v535 = vunpack.c.l.b16 %v391
        %v536 = vunpack.c.l.b16 %v392
        %v537 = vunpack.c.l.b16 %v393
        %v538 = vunpack.c.l.b16 %v394
        %v539 = vunpack.c.l.b16 %v395
        %v540 = vunpack.c.l.b16 %v396
        %v541 = vunpack.c.l.b16 %v397
        %v542 = vunpack.c.l.b16 %v398
        %v543 = vunpack.c.l.b16 %v399
        %v544 = vunpack.c.l.b16 %v400
        %v545 = vunpack.c.l.b16 %v401
        %v546 = vunpack.c.l.b16 %v402
        %v547 = vunpack.c.l.b16 %v403
        %v548 = vunpack.c.l.b16 %v404
        %v549 = vunpack.c.l.b16 %v405
        %v550 = vunpack.c.l.b16 %v406
        %v551 = vunpack.c.l.b16 %v407
        %v552 = vunpack.c.l.b16 %v408
        %v553 = vunpack.c.l.b16 %v409
        %v554 = vunpack.c.l.b16 %v410
        %v555 = vunpack.c.l.b16 %v411
        %v556 = vunpack.c.l.b16 %v412
        %v557 = vunpack.c.l.b16 %v413
        %v558 = vunpack.c.l.b16 %v414
        %v559 = vunpack.c.l.b16 %v415
        %v560 = vunpack.c.l.b16 %v416
        %v561 = vunpack.c.l.b16 %v417
        %v562 = vunpack.c.l.b16 %v418
        %v563 = vunpack.c.l.b16 %v419
        %v564 = vunpack.c.l.b16 %v420
        %v565 = vunpack.c.l.b16 %v421
        %v566 = vunpack.c.l.b16 %v422
        %v567 = vunpack.c.l.b16 %v423
        %v568 = vunpack.c.l.b16 %v424
        %v569 = vunpack.c.l.b16 %v425
        %v570 = vunpack.c.l.b16 %v426
        %v571 = vunpack.c.l.b16 %v427
        %v572 = vunpack.c.l.b16 %v428
        %v573 = vunpack.c.l.b16 %v429
        %v574 = vunpack.c.l.b16 %v430
        %v575 = vunpack.c.l.b16 %v431
        %v576 = vunpack.c.l.b16 %v432
        %v577 = vunpack.c.l.b16 %v433
        %v578 = vunpack.c.l.b16 %v434
        %v579 = vunpack.c.l.b16 %v435
        %v580 = vunpack.c.l.b16 %v436
        %v581 = vunpack.c.l.b16 %v437
        %v582 = vunpack.c.l.b16 %v438
        %v583 = vunpack.c.l.b16 %v439
        %v584 = vunpack.c.l.b16 %v440
        %v585 = vunpack.c.l.b16 %v441
        %v586 = vunpack.c.l.b16 %v442
        %v587 = vunpack.c.l.b16 %v443
        %v588 = vunpack.c.l.b16 %v444
        %v589 = vunpack.c.l.b16 %v445
        %v590 = vunpack.c.l.b16 %v446
        %v591 = vunpack.c.l.b16 %v447
        %v592 = vunpack.c.l.b16 %v448
        %v593 = vunpack.c.l.b16 %v449
        %v594 = vunpack.c.l.b16 %v450
        %v595 = vunpack.c.l.b16 %v451
        %v596 = vpack.c.b16 %v533, %v532
        %v597 = vpack.c.b16 %v535, %v534
        %v598 = vpack.c.b16 %v537, %v536
        %v599 = vpack.c.b16 %v539, %v538
        %v600 = vpack.c.b16 %v541, %v540
        %v601 = vpack.c.b16 %v543, %v542
        %v602 = vpack.c.b16 %v545, %v544
        %v603 = vpack.c.b16 %v547, %v546
        %v604 = vpack.c.b16 %v549, %v548
        %v605 = vpack.c.b16 %v551, %v550
        %v606 = vpack.c.b16 %v553, %v552
        %v607 = vpack.c.b16 %v555, %v554
        %v608 = vpack.c.b16 %v557, %v556
        %v609 = vpack.c.b16 %v559, %v558
        %v610 = vpack.c.b16 %v561, %v560
        %v611 = vpack.c.b16 %v563, %v562
        %v612 = vpack.c.b16 %v565, %v564
        %v613 = vpack.c.b16 %v567, %v566
        %v614 = vpack.c.b16 %v569, %v568
        %v615 = vpack.c.b16 %v571, %v570
        %v616 = vpack.c.b16 %v573, %v572
        %v617 = vpack.c.b16 %v575, %v574
        %v618 = vpack.c.b16 %v577, %v576
        %v619 = vpack.c.b16 %v579, %v578
        %v620 = vpack.c.b16 %v581, %v580
        %v621 = vpack.c.b16 %v583, %v582
        %v622 = vpack.c.b16 %v585, %v584
        %v623 = vpack.c.b16 %v587, %v586
        %v624 = vpack.c.b16 %v589, %v588
        %v625 = vpack.c.b16 %v591, %v590
        %v626 = vpack.c.b16 %v593, %v592
        %v627 = vpack.c.b16 %v595, %v594
        %v676 = vunpack.c.l.b16 %v452
        %v677 = vunpack.c.l.b16 %v453
        %v678 = vunpack.c.l.b16 %v454
        %v679 = vunpack.c.l.b16 %v455
        %v680 = vunpack.c.l.b16 %v456
        %v681 = vunpack.c.l.b16 %v457
        %v682 = vunpack.c.l.b16 %v458
        %v683 = vunpack.c.l.b16 %v459
        %v684 = vunpack.c.l.b16 %v460
        %v685 = vunpack.c.l.b16 %v461
        %v686 = vunpack.c.l.b16 %v462
        %v687 = vunpack.c.l.b16 %v463
        %v688 = vunpack.c.l.b16 %v464
        %v689 = vunpack.c.l.b16 %v465
        %v690 = vunpack.c.l.b16 %v466
        %v691 = vunpack.c.l.b16 %v467
        %v692 = vpack.c.b16 %v677, %v676
        %v693 = vpack.c.b16 %v679, %v678
        %v694 = vpack.c.b16 %v681, %v680
        %v695 = vpack.c.b16 %v683, %v682
        %v696 = vpack.c.b16 %v685, %v684
        %v697 = vpack.c.b16 %v687, %v686
        %v698 = vpack.c.b16 %v689, %v688
        %v699 = vpack.c.b16 %v691, %v690
        %708 = vmatprep.subr.bf16.mxu0 0
        %709 = vmatpush1.bf16.msra.mxu0 %v692
        %710 = vmatprep.subr.bf16.mxu0 0
        %711 = vmatpush1.bf16.msra.mxu0 %v693
        %712 = vmatprep.subr.bf16.mxu0 0
        %713 = vmatpush1.bf16.msra.mxu0 %v694
        %714 = vmatprep.subr.bf16.mxu0 0
        %715 = vmatpush1.bf16.msra.mxu0 %v695
        %716 = vmatprep.subr.bf16.mxu0 0
        %717 = vmatpush1.bf16.msra.mxu0 %v696
        %718 = vmatprep.subr.bf16.mxu0 0
        %719 = vmatpush1.bf16.msra.mxu0 %v697
        %720 = vmatprep.subr.bf16.mxu0 0
        %721 = vmatpush1.bf16.msra.mxu0 %v698
        %722 = vmatprep.subr.bf16.mxu0 0
        %723 = vmatpush1.bf16.msra.mxu0 %v699
        %724 = vmatprep.subr.bf16.mxu0 0
        %725 = vmatpush1.bf16.msra.mxu0 0
        %726 = vmatprep.subr.bf16.mxu0 0
        %727 = vmatpush1.bf16.msra.mxu0 0
        %728 = vmatprep.subr.bf16.mxu0 0
        %729 = vmatpush1.bf16.msra.mxu0 0
        %730 = vmatprep.subr.bf16.mxu0 0
        %731 = vmatpush1.bf16.msra.mxu0 0
        %732 = vmatprep.subr.bf16.mxu0 0
        %733 = vmatpush1.bf16.msra.mxu0 0
        %734 = vmatprep.subr.bf16.mxu0 0
        %735 = vmatpush1.bf16.msra.mxu0 0
        %736 = vmatprep.subr.bf16.mxu0 0
        %737 = vmatpush1.bf16.msra.mxu0 0
        %738 = vmatprep.subr.bf16.mxu0 0
        %739 = vmatpush1.bf16.msra.mxu0 0
        %740 = vmatprep.mubr.bf16.mxu0 0
        %741 = vmatmul.mubr.bf16.gmra.mrb[0].mxu0 %v596
        %v742 = vpop.f32.mrb[0].mxu0
        %v743 = vadd.f32 0.0, %v742
        %v744 = vpop.f32.mrb[0].mxu0
        %v745 = vpop.f32.mrb[0].mxu0
        %v746 = vadd.f32 0.0, %v745
        %v747 = vpop.f32.mrb[0].mxu0
        %748 = vmatprep.mubr.bf16.mxu0 0
        %749 = vmatmul.mubr.bf16.gmra.mrb[0].mxu0 %v597
        %v750 = vpop.f32.mrb[0].mxu0
        %v751 = vadd.f32 0.0, %v750
        %v752 = vpop.f32.mrb[0].mxu0
        %v753 = vpop.f32.mrb[0].mxu0
        %v754 = vadd.f32 0.0, %v753
        %v755 = vpop.f32.mrb[0].mxu0
        %756 = vmatprep.mubr.bf16.mxu0 0
        %757 = vmatmul.mubr.bf16.gmra.mrb[0].mxu0 %v598
        %v758 = vpop.f32.mrb[0].mxu0
        %v759 = vadd.f32 0.0, %v758
        %v760 = vpop.f32.mrb[0].mxu0
        %v761 = vpop.f32.mrb[0].mxu0
        %v762 = vadd.f32 0.0, %v761
        %v763 = vpop.f32.mrb[0].mxu0
        %764 = vmatprep.mubr.bf16.mxu0 0
        %765 = vmatmul.mubr.bf16.gmra.mrb[0].mxu0 %v599
        %v766 = vpop.f32.mrb[0].mxu0
        %v767 = vadd.f32 0.0, %v766
        %v768 = vpop.f32.mrb[0].mxu0
        %v769 = vpop.f32.mrb[0].mxu0
        %v770 = vadd.f32 0.0, %v769
        %v771 = vpop.f32.mrb[0].mxu0
        %772 = vmatprep.mubr.bf16.mxu0 0
        %773 = vmatmul.mubr.bf16.gmra.mrb[0].mxu0 %v600
        %v774 = vpop.f32.mrb[0].mxu0
        %v775 = vadd.f32 0.0, %v774
        %v776 = vpop.f32.mrb[0].mxu0
        %v777 = vpop.f32.mrb[0].mxu0
        %v778 = vadd.f32 0.0, %v777
        %v779 = vpop.f32.mrb[0].mxu0
        %780 = vmatprep.mubr.bf16.mxu0 0
        %781 = vmatmul.mubr.bf16.gmra.mrb[0].mxu0 %v601
        %v782 = vpop.f32.mrb[0].mxu0
        %v783 = vadd.f32 0.0, %v782
        %v784 = vpop.f32.mrb[0].mxu0
        %v785 = vpop.f32.mrb[0].mxu0
        %v786 = vadd.f32 0.0, %v785
        %v787 = vpop.f32.mrb[0].mxu0
        %788 = vmatprep.mubr.bf16.mxu0 0
        %789 = vmatmul.mubr.bf16.gmra.mrb[0].mxu0 %v602
        %v790 = vpop.f32.mrb[0].mxu0
        %v791 = vadd.f32 0.0, %v790
        %v792 = vpop.f32.mrb[0].mxu0
        %v793 = vpop.f32.mrb[0].mxu0
        %v794 = vadd.f32 0.0, %v793
        %v795 = vpop.f32.mrb[0].mxu0
        %796 = vmatprep.mubr.bf16.mxu0 0
        %797 = vmatmul.mubr.bf16.gmra.mrb[0].mxu0 %v603
        %v798 = vpop.f32.mrb[0].mxu0
        %v799 = vadd.f32 0.0, %v798
        %v800 = vpop.f32.mrb[0].mxu0
        %v801 = vpop.f32.mrb[0].mxu0
        %v802 = vadd.f32 0.0, %v801
        %v803 = vpop.f32.mrb[0].mxu0
        %804 = vmatprep.mubr.bf16.mxu0 0
        %805 = vmatmul.mubr.bf16.gmra.mrb[0].mxu0 %v604
        %v806 = vpop.f32.mrb[0].mxu0
        %v807 = vadd.f32 0.0, %v806
        %v808 = vpop.f32.mrb[0].mxu0
        %v809 = vpop.f32.mrb[0].mxu0
        %v810 = vadd.f32 0.0, %v809
        %v811 = vpop.f32.mrb[0].mxu0
        %812 = vmatprep.mubr.bf16.mxu0 0
        %813 = vmatmul.mubr.bf16.gmra.mrb[0].mxu0 %v605
        %v814 = vpop.f32.mrb[0].mxu0
        %v815 = vadd.f32 0.0, %v814
        %v816 = vpop.f32.mrb[0].mxu0
        %v817 = vpop.f32.mrb[0].mxu0
        %v818 = vadd.f32 0.0, %v817
        %v819 = vpop.f32.mrb[0].mxu0
        %820 = vmatprep.mubr.bf16.mxu0 0
        %821 = vmatmul.mubr.bf16.gmra.mrb[0].mxu0 %v606
        %v822 = vpop.f32.mrb[0].mxu0
        %v823 = vadd.f32 0.0, %v822
        %v824 = vpop.f32.mrb[0].mxu0
        %v825 = vpop.f32.mrb[0].mxu0
        %v826 = vadd.f32 0.0, %v825
        %v827 = vpop.f32.mrb[0].mxu0
        %828 = vmatprep.mubr.bf16.mxu0 0
        %829 = vmatmul.mubr.bf16.gmra.mrb[0].mxu0 %v607
        %v830 = vpop.f32.mrb[0].mxu0
        %v831 = vadd.f32 0.0, %v830
        %v832 = vpop.f32.mrb[0].mxu0
        %v833 = vpop.f32.mrb[0].mxu0
        %v834 = vadd.f32 0.0, %v833
        %v835 = vpop.f32.mrb[0].mxu0
        %836 = vmatprep.mubr.bf16.mxu0 0
        %837 = vmatmul.mubr.bf16.gmra.mrb[0].mxu0 %v608
        %v838 = vpop.f32.mrb[0].mxu0
        %v839 = vadd.f32 0.0, %v838
        %v840 = vpop.f32.mrb[0].mxu0
        %v841 = vpop.f32.mrb[0].mxu0
        %v842 = vadd.f32 0.0, %v841
        %v843 = vpop.f32.mrb[0].mxu0
        %844 = vmatprep.mubr.bf16.mxu0 0
        %845 = vmatmul.mubr.bf16.gmra.mrb[0].mxu0 %v609
        %v846 = vpop.f32.mrb[0].mxu0
        %v847 = vadd.f32 0.0, %v846
        %v848 = vpop.f32.mrb[0].mxu0
        %v849 = vpop.f32.mrb[0].mxu0
        %v850 = vadd.f32 0.0, %v849
        %v851 = vpop.f32.mrb[0].mxu0
        %852 = vmatprep.mubr.bf16.mxu0 0
        %853 = vmatmul.mubr.bf16.gmra.mrb[0].mxu0 %v610
        %v854 = vpop.f32.mrb[0].mxu0
        %v855 = vadd.f32 0.0, %v854
        %v856 = vpop.f32.mrb[0].mxu0
        %v857 = vpop.f32.mrb[0].mxu0
        %v858 = vadd.f32 0.0, %v857
        %v859 = vpop.f32.mrb[0].mxu0
        %860 = vmatprep.mubr.bf16.mxu0 0
        %861 = vmatmul.mubr.bf16.gmra.mrb[0].mxu0 %v611
        %v862 = vpop.f32.mrb[0].mxu0
        %v863 = vadd.f32 0.0, %v862
        %v864 = vpop.f32.mrb[0].mxu0
        %v865 = vpop.f32.mrb[0].mxu0
        %v866 = vadd.f32 0.0, %v865
        %v867 = vpop.f32.mrb[0].mxu0
        %868 = vmatprep.mubr.bf16.mxu0 0
        %869 = vmatmul.mubr.bf16.gmra.mrb[0].mxu0 %v612
        %v870 = vpop.f32.mrb[0].mxu0
        %v871 = vadd.f32 0.0, %v870
        %v872 = vpop.f32.mrb[0].mxu0
        %v873 = vpop.f32.mrb[0].mxu0
        %v874 = vadd.f32 0.0, %v873
        %v875 = vpop.f32.mrb[0].mxu0
        %876 = vmatprep.mubr.bf16.mxu0 0
        %877 = vmatmul.mubr.bf16.gmra.mrb[0].mxu0 %v613
        %v878 = vpop.f32.mrb[0].mxu0
        %v879 = vadd.f32 0.0, %v878
        %v880 = vpop.f32.mrb[0].mxu0
        %v881 = vpop.f32.mrb[0].mxu0
        %v882 = vadd.f32 0.0, %v881
        %v883 = vpop.f32.mrb[0].mxu0
        %884 = vmatprep.mubr.bf16.mxu0 0
        %885 = vmatmul.mubr.bf16.gmra.mrb[0].mxu0 %v614
        %v886 = vpop.f32.mrb[0].mxu0
        %v887 = vadd.f32 0.0, %v886
        %v888 = vpop.f32.mrb[0].mxu0
        %v889 = vpop.f32.mrb[0].mxu0
        %v890 = vadd.f32 0.0, %v889
        %v891 = vpop.f32.mrb[0].mxu0
        %892 = vmatprep.mubr.bf16.mxu0 0
        %893 = vmatmul.mubr.bf16.gmra.mrb[0].mxu0 %v615
        %v894 = vpop.f32.mrb[0].mxu0
        %v895 = vadd.f32 0.0, %v894
        %v896 = vpop.f32.mrb[0].mxu0
        %v897 = vpop.f32.mrb[0].mxu0
        %v898 = vadd.f32 0.0, %v897
        %v899 = vpop.f32.mrb[0].mxu0
        %900 = vmatprep.mubr.bf16.mxu0 0
        %901 = vmatmul.mubr.bf16.gmra.mrb[0].mxu0 %v616
        %v902 = vpop.f32.mrb[0].mxu0
        %v903 = vadd.f32 0.0, %v902
        %v904 = vpop.f32.mrb[0].mxu0
        %v905 = vpop.f32.mrb[0].mxu0
        %v906 = vadd.f32 0.0, %v905
        %v907 = vpop.f32.mrb[0].mxu0
        %908 = vmatprep.mubr.bf16.mxu0 0
        %909 = vmatmul.mubr.bf16.gmra.mrb[0].mxu0 %v617
        %v910 = vpop.f32.mrb[0].mxu0
        %v911 = vadd.f32 0.0, %v910
        %v912 = vpop.f32.mrb[0].mxu0
        %v913 = vpop.f32.mrb[0].mxu0
        %v914 = vadd.f32 0.0, %v913
        %v915 = vpop.f32.mrb[0].mxu0
        %916 = vmatprep.mubr.bf16.mxu0 0
        %917 = vmatmul.mubr.bf16.gmra.mrb[0].mxu0 %v618
        %v918 = vpop.f32.mrb[0].mxu0
        %v919 = vadd.f32 0.0, %v918
        %v920 = vpop.f32.mrb[0].mxu0
        %v921 = vpop.f32.mrb[0].mxu0
        %v922 = vadd.f32 0.0, %v921
        %v923 = vpop.f32.mrb[0].mxu0
        %924 = vmatprep.mubr.bf16.mxu0 0
        %925 = vmatmul.mubr.bf16.gmra.mrb[0].mxu0 %v619
        %v926 = vpop.f32.mrb[0].mxu0
        %v927 = vadd.f32 0.0, %v926
        %v928 = vpop.f32.mrb[0].mxu0
        %v929 = vpop.f32.mrb[0].mxu0
        %v930 = vadd.f32 0.0, %v929
        %v931 = vpop.f32.mrb[0].mxu0
        %932 = vmatprep.mubr.bf16.mxu0 0
        %933 = vmatmul.mubr.bf16.gmra.mrb[0].mxu0 %v620
        %v934 = vpop.f32.mrb[0].mxu0
        %v935 = vadd.f32 0.0, %v934
        %v936 = vpop.f32.mrb[0].mxu0
        %v937 = vpop.f32.mrb[0].mxu0
        %v938 = vadd.f32 0.0, %v937
        %v939 = vpop.f32.mrb[0].mxu0
        %940 = vmatprep.mubr.bf16.mxu0 0
        %941 = vmatmul.mubr.bf16.gmra.mrb[0].mxu0 %v621
        %v942 = vpop.f32.mrb[0].mxu0
        %v943 = vadd.f32 0.0, %v942
        %v944 = vpop.f32.mrb[0].mxu0
        %v945 = vpop.f32.mrb[0].mxu0
        %v946 = vadd.f32 0.0, %v945
        %v947 = vpop.f32.mrb[0].mxu0
        %948 = vmatprep.mubr.bf16.mxu0 0
        %949 = vmatmul.mubr.bf16.gmra.mrb[0].mxu0 %v622
        %v950 = vpop.f32.mrb[0].mxu0
        %v951 = vadd.f32 0.0, %v950
        %v952 = vpop.f32.mrb[0].mxu0
        %v953 = vpop.f32.mrb[0].mxu0
        %v954 = vadd.f32 0.0, %v953
        %v955 = vpop.f32.mrb[0].mxu0
        %956 = vmatprep.mubr.bf16.mxu0 0
        %957 = vmatmul.mubr.bf16.gmra.mrb[0].mxu0 %v623
        %v958 = vpop.f32.mrb[0].mxu0
        %v959 = vadd.f32 0.0, %v958
        %v960 = vpop.f32.mrb[0].mxu0
        %v961 = vpop.f32.mrb[0].mxu0
        %v962 = vadd.f32 0.0, %v961
        %v963 = vpop.f32.mrb[0].mxu0
        %964 = vmatprep.mubr.bf16.mxu0 0
        %965 = vmatmul.mubr.bf16.gmra.mrb[0].mxu0 %v624
        %v966 = vpop.f32.mrb[0].mxu0
        %v967 = vadd.f32 0.0, %v966
        %v968 = vpop.f32.mrb[0].mxu0
        %v969 = vpop.f32.mrb[0].mxu0
        %v970 = vadd.f32 0.0, %v969
        %v971 = vpop.f32.mrb[0].mxu0
        %972 = vmatprep.mubr.bf16.mxu0 0
        %973 = vmatmul.mubr.bf16.gmra.mrb[0].mxu0 %v625
        %v974 = vpop.f32.mrb[0].mxu0
        %v975 = vadd.f32 0.0, %v974
        %v976 = vpop.f32.mrb[0].mxu0
        %v977 = vpop.f32.mrb[0].mxu0
        %v978 = vadd.f32 0.0, %v977
        %v979 = vpop.f32.mrb[0].mxu0
        %980 = vmatprep.mubr.bf16.mxu0 0
        %981 = vmatmul.mubr.bf16.gmra.mrb[0].mxu0 %v626
        %v982 = vpop.f32.mrb[0].mxu0
        %v983 = vadd.f32 0.0, %v982
        %v984 = vpop.f32.mrb[0].mxu0
        %v985 = vpop.f32.mrb[0].mxu0
        %v986 = vadd.f32 0.0, %v985
        %v987 = vpop.f32.mrb[0].mxu0
        %988 = vmatprep.mubr.bf16.mxu0 0
        %989 = vmatmul.mubr.bf16.gmra.mrb[0].mxu0 %v627
        %v990 = vpop.f32.mrb[0].mxu0
        %v991 = vadd.f32 0.0, %v990
        %v992 = vpop.f32.mrb[0].mxu0
        %v993 = vpop.f32.mrb[0].mxu0
        %v994 = vadd.f32 0.0, %v993
        %v995 = vpop.f32.mrb[0].mxu0
        %996 = vdwg.mxu0
        %v997 = vadd.f32 %v324, %v743
        %v998 = vadd.f32 %v325, %v746
        %v999 = vadd.f32 %v326, %v751
        %v1000 = vadd.f32 %v327, %v754
        %v1001 = vadd.f32 %v328, %v759
        %v1002 = vadd.f32 %v329, %v762
        %v1003 = vadd.f32 %v330, %v767
        %v1004 = vadd.f32 %v331, %v770
        %v1005 = vadd.f32 %v332, %v775
        %v1006 = vadd.f32 %v333, %v778
        %v1007 = vadd.f32 %v334, %v783
        %v1008 = vadd.f32 %v335, %v786
        %v1009 = vadd.f32 %v336, %v791
        %v1010 = vadd.f32 %v337, %v794
        %v1011 = vadd.f32 %v338, %v799
        %v1012 = vadd.f32 %v339, %v802
        %v1013 = vadd.f32 %v340, %v807
        %v1014 = vadd.f32 %v341, %v810
        %v1015 = vadd.f32 %v342, %v815
        %v1016 = vadd.f32 %v343, %v818
        %v1017 = vadd.f32 %v344, %v823
        %v1018 = vadd.f32 %v345, %v826
        %v1019 = vadd.f32 %v346, %v831
        %v1020 = vadd.f32 %v347, %v834
        %v1021 = vadd.f32 %v348, %v839
        %v1022 = vadd.f32 %v349, %v842
        %v1023 = vadd.f32 %v350, %v847
        %v1024 = vadd.f32 %v351, %v850
        %v1025 = vadd.f32 %v352, %v855
        %v1026 = vadd.f32 %v353, %v858
        %v1027 = vadd.f32 %v354, %v863
        %v1028 = vadd.f32 %v355, %v866
        %v1029 = vadd.f32 %v356, %v871
        %v1030 = vadd.f32 %v357, %v874
        %v1031 = vadd.f32 %v358, %v879
        %v1032 = vadd.f32 %v359, %v882
        %v1033 = vadd.f32 %v360, %v887
        %v1034 = vadd.f32 %v361, %v890
        %v1035 = vadd.f32 %v362, %v895
        %v1036 = vadd.f32 %v363, %v898
        %v1037 = vadd.f32 %v364, %v903
        %v1038 = vadd.f32 %v365, %v906
        %v1039 = vadd.f32 %v366, %v911
        %v1040 = vadd.f32 %v367, %v914
        %v1041 = vadd.f32 %v368, %v919
        %v1042 = vadd.f32 %v369, %v922
        %v1043 = vadd.f32 %v370, %v927
        %v1044 = vadd.f32 %v371, %v930
        %v1045 = vadd.f32 %v372, %v935
        %v1046 = vadd.f32 %v373, %v938
        %v1047 = vadd.f32 %v374, %v943
        %v1048 = vadd.f32 %v375, %v946
        %v1049 = vadd.f32 %v376, %v951
        %v1050 = vadd.f32 %v377, %v954
        %v1051 = vadd.f32 %v378, %v959
        %v1052 = vadd.f32 %v379, %v962
        %v1053 = vadd.f32 %v380, %v967
        %v1054 = vadd.f32 %v381, %v970
        %v1055 = vadd.f32 %v382, %v975
        %v1056 = vadd.f32 %v383, %v978
        %v1057 = vadd.f32 %v384, %v983
        %v1058 = vadd.f32 %v385, %v986
        %v1059 = vadd.f32 %v386, %v991
        %v1060 = vadd.f32 %v387, %v994
        %1061 = vst [vmem:[#allocation2] sm:$0xff] %v997
        %1062 = vst [vmem:[#allocation2 + $0x8] sm:$0xff] %v998
        %1063 = vst [vmem:[#allocation2 + $0x10] sm:$0xff] %v999
        %1064 = vst [vmem:[#allocation2 + $0x18] sm:$0xff] %v1000
        %1065 = vst [vmem:[#allocation2 + $0x20] sm:$0xff] %v1001
        %1066 = vst [vmem:[#allocation2 + $0x28] sm:$0xff] %v1002
        %1067 = vst [vmem:[#allocation2 + $0x30] sm:$0xff] %v1003
        %1068 = vst [vmem:[#allocation2 + $0x38] sm:$0xff] %v1004
        %1069 = vst [vmem:[#allocation2 + $0x40] sm:$0xff] %v1005
        %1070 = vst [vmem:[#allocation2 + $0x48] sm:$0xff] %v1006
        %1071 = vst [vmem:[#allocation2 + $0x50] sm:$0xff] %v1007
        %1072 = vst [vmem:[#allocation2 + $0x58] sm:$0xff] %v1008
        %1073 = vst [vmem:[#allocation2 + $0x60] sm:$0xff] %v1009
        %1074 = vst [vmem:[#allocation2 + $0x68] sm:$0xff] %v1010
        %1075 = vst [vmem:[#allocation2 + $0x70] sm:$0xff] %v1011
        %1076 = vst [vmem:[#allocation2 + $0x78] sm:$0xff] %v1012
        %1077 = vst [vmem:[#allocation2 + $0x80] sm:$0xff] %v1013
        %1078 = vst [vmem:[#allocation2 + $0x88] sm:$0xff] %v1014
        %1079 = vst [vmem:[#allocation2 + $0x90] sm:$0xff] %v1015
        %1080 = vst [vmem:[#allocation2 + $0x98] sm:$0xff] %v1016
        %1081 = vst [vmem:[#allocation2 + $0xa0] sm:$0xff] %v1017
        %1082 = vst [vmem:[#allocation2 + $0xa8] sm:$0xff] %v1018
        %1083 = vst [vmem:[#allocation2 + $0xb0] sm:$0xff] %v1019
        %1084 = vst [vmem:[#allocation2 + $0xb8] sm:$0xff] %v1020
        %1085 = vst [vmem:[#allocation2 + $0xc0] sm:$0xff] %v1021
        %1086 = vst [vmem:[#allocation2 + $0xc8] sm:$0xff] %v1022
        %1087 = vst [vmem:[#allocation2 + $0xd0] sm:$0xff] %v1023
        %1088 = vst [vmem:[#allocation2 + $0xd8] sm:$0xff] %v1024
        %1089 = vst [vmem:[#allocation2 + $0xe0] sm:$0xff] %v1025
        %1090 = vst [vmem:[#allocation2 + $0xe8] sm:$0xff] %v1026
        %1091 = vst [vmem:[#allocation2 + $0xf0] sm:$0xff] %v1027
        %1092 = vst [vmem:[#allocation2 + $0xf8] sm:$0xff] %v1028
        %1093 = vst [vmem:[#allocation2 + $0x100] sm:$0xff] %v1029
        %1094 = vst [vmem:[#allocation2 + $0x108] sm:$0xff] %v1030
        %1095 = vst [vmem:[#allocation2 + $0x110] sm:$0xff] %v1031
        %1096 = vst [vmem:[#allocation2 + $0x118] sm:$0xff] %v1032
        %1097 = vst [vmem:[#allocation2 + $0x120] sm:$0xff] %v1033
        %1098 = vst [vmem:[#allocation2 + $0x128] sm:$0xff] %v1034
        %1099 = vst [vmem:[#allocation2 + $0x130] sm:$0xff] %v1035
        %1100 = vst [vmem:[#allocation2 + $0x138] sm:$0xff] %v1036
        %1101 = vst [vmem:[#allocation2 + $0x140] sm:$0xff] %v1037
        %1102 = vst [vmem:[#allocation2 + $0x148] sm:$0xff] %v1038
        %1103 = vst [vmem:[#allocation2 + $0x150] sm:$0xff] %v1039
        %1104 = vst [vmem:[#allocation2 + $0x158] sm:$0xff] %v1040
        %1105 = vst [vmem:[#allocation2 + $0x160] sm:$0xff] %v1041
        %1106 = vst [vmem:[#allocation2 + $0x168] sm:$0xff] %v1042
        %1107 = vst [vmem:[#allocation2 + $0x170] sm:$0xff] %v1043
        %1108 = vst [vmem:[#allocation2 + $0x178] sm:$0xff] %v1044
        %1109 = vst [vmem:[#allocation2 + $0x180] sm:$0xff] %v1045
        %1110 = vst [vmem:[#allocation2 + $0x188] sm:$0xff] %v1046
        %1111 = vst [vmem:[#allocation2 + $0x190] sm:$0xff] %v1047
        %1112 = vst [vmem:[#allocation2 + $0x198] sm:$0xff] %v1048
        %1113 = vst [vmem:[#allocation2 + $0x1a0] sm:$0xff] %v1049
        %1114 = vst [vmem:[#allocation2 + $0x1a8] sm:$0xff] %v1050
        %1115 = vst [vmem:[#allocation2 + $0x1b0] sm:$0xff] %v1051
        %1116 = vst [vmem:[#allocation2 + $0x1b8] sm:$0xff] %v1052
        %1117 = vst [vmem:[#allocation2 + $0x1c0] sm:$0xff] %v1053
        %1118 = vst [vmem:[#allocation2 + $0x1c8] sm:$0xff] %v1054
        %1119 = vst [vmem:[#allocation2 + $0x1d0] sm:$0xff] %v1055
        %1120 = vst [vmem:[#allocation2 + $0x1d8] sm:$0xff] %v1056
        %1121 = vst [vmem:[#allocation2 + $0x1e0] sm:$0xff] %v1057
        %1122 = vst [vmem:[#allocation2 + $0x1e8] sm:$0xff] %v1058
        %1123 = vst [vmem:[#allocation2 + $0x1f0] sm:$0xff] %v1059
        %1124 = vst [vmem:[#allocation2 + $0x1f8] sm:$0xff] %v1060
        // Predicated region
        $region41: #{tpu_custom_call.1} parent=27 // pred_check
          %p1125 = pneg %p256
        $region42: #{tpu_custom_call.1} parent=27 // pred_check_branch
          %1127 = sbr.rel (%p1125) target = $region44
        $region43: #{tpu_custom_call.1} parent=27 // pred_region
          %v1128 = vld [vmem:[#allocation2] sm:$0xff]
          %v1129 = vld [vmem:[#allocation2 + $0x8] sm:$0xff]
          %v1130 = vld [vmem:[#allocation2 + $0x10] sm:$0xff]
          %v1131 = vld [vmem:[#allocation2 + $0x18] sm:$0xff]
          %v1132 = vld [vmem:[#allocation2 + $0x20] sm:$0xff]
          %v1133 = vld [vmem:[#allocation2 + $0x28] sm:$0xff]
          %v1134 = vld [vmem:[#allocation2 + $0x30] sm:$0xff]
          %v1135 = vld [vmem:[#allocation2 + $0x38] sm:$0xff]
          %v1136 = vld [vmem:[#allocation2 + $0x40] sm:$0xff]
          %v1137 = vld [vmem:[#allocation2 + $0x48] sm:$0xff]
          %v1138 = vld [vmem:[#allocation2 + $0x50] sm:$0xff]
          %v1139 = vld [vmem:[#allocation2 + $0x58] sm:$0xff]
          %v1140 = vld [vmem:[#allocation2 + $0x60] sm:$0xff]
          %v1141 = vld [vmem:[#allocation2 + $0x68] sm:$0xff]
          %v1142 = vld [vmem:[#allocation2 + $0x70] sm:$0xff]
          %v1143 = vld [vmem:[#allocation2 + $0x78] sm:$0xff]
          %v1144 = vld [vmem:[#allocation2 + $0x80] sm:$0xff]
          %v1145 = vld [vmem:[#allocation2 + $0x88] sm:$0xff]
          %v1146 = vld [vmem:[#allocation2 + $0x90] sm:$0xff]
          %v1147 = vld [vmem:[#allocation2 + $0x98] sm:$0xff]
          %v1148 = vld [vmem:[#allocation2 + $0xa0] sm:$0xff]
          %v1149 = vld [vmem:[#allocation2 + $0xa8] sm:$0xff]
          %v1150 = vld [vmem:[#allocation2 + $0xb0] sm:$0xff]
          %v1151 = vld [vmem:[#allocation2 + $0xb8] sm:$0xff]
          %v1152 = vld [vmem:[#allocation2 + $0xc0] sm:$0xff]
          %v1153 = vld [vmem:[#allocation2 + $0xc8] sm:$0xff]
          %v1154 = vld [vmem:[#allocation2 + $0xd0] sm:$0xff]
          %v1155 = vld [vmem:[#allocation2 + $0xd8] sm:$0xff]
          %v1156 = vld [vmem:[#allocation2 + $0xe0] sm:$0xff]
          %v1157 = vld [vmem:[#allocation2 + $0xe8] sm:$0xff]
          %v1158 = vld [vmem:[#allocation2 + $0xf0] sm:$0xff]
          %v1159 = vld [vmem:[#allocation2 + $0xf8] sm:$0xff]
          %v1160 = vld [vmem:[#allocation2 + $0x100] sm:$0xff]
          %v1161 = vld [vmem:[#allocation2 + $0x108] sm:$0xff]
          %v1162 = vld [vmem:[#allocation2 + $0x110] sm:$0xff]
          %v1163 = vld [vmem:[#allocation2 + $0x118] sm:$0xff]
          %v1164 = vld [vmem:[#allocation2 + $0x120] sm:$0xff]
          %v1165 = vld [vmem:[#allocation2 + $0x128] sm:$0xff]
          %v1166 = vld [vmem:[#allocation2 + $0x130] sm:$0xff]
          %v1167 = vld [vmem:[#allocation2 + $0x138] sm:$0xff]
          %v1168 = vld [vmem:[#allocation2 + $0x140] sm:$0xff]
          %v1169 = vld [vmem:[#allocation2 + $0x148] sm:$0xff]
          %v1170 = vld [vmem:[#allocation2 + $0x150] sm:$0xff]
          %v1171 = vld [vmem:[#allocation2 + $0x158] sm:$0xff]
          %v1172 = vld [vmem:[#allocation2 + $0x160] sm:$0xff]
          %v1173 = vld [vmem:[#allocation2 + $0x168] sm:$0xff]
          %v1174 = vld [vmem:[#allocation2 + $0x170] sm:$0xff]
          %v1175 = vld [vmem:[#allocation2 + $0x178] sm:$0xff]
          %v1176 = vld [vmem:[#allocation2 + $0x180] sm:$0xff]
          %v1177 = vld [vmem:[#allocation2 + $0x188] sm:$0xff]
          %v1178 = vld [vmem:[#allocation2 + $0x190] sm:$0xff]
          %v1179 = vld [vmem:[#allocation2 + $0x198] sm:$0xff]
          %v1180 = vld [vmem:[#allocation2 + $0x1a0] sm:$0xff]
          %v1181 = vld [vmem:[#allocation2 + $0x1a8] sm:$0xff]
          %v1182 = vld [vmem:[#allocation2 + $0x1b0] sm:$0xff]
          %v1183 = vld [vmem:[#allocation2 + $0x1b8] sm:$0xff]
          %v1184 = vld [vmem:[#allocation2 + $0x1c0] sm:$0xff]
          %v1185 = vld [vmem:[#allocation2 + $0x1c8] sm:$0xff]
          %v1186 = vld [vmem:[#allocation2 + $0x1d0] sm:$0xff]
          %v1187 = vld [vmem:[#allocation2 + $0x1d8] sm:$0xff]
          %v1188 = vld [vmem:[#allocation2 + $0x1e0] sm:$0xff]
          %v1189 = vld [vmem:[#allocation2 + $0x1e8] sm:$0xff]
          %v1190 = vld [vmem:[#allocation2 + $0x1f0] sm:$0xff]
          %v1191 = vld [vmem:[#allocation2 + $0x1f8] sm:$0xff]
          %v1192 = vpack.c.bf16 %v1129, %v1128
          %v1193 = vpack.c.bf16 %v1131, %v1130
          %v1194 = vpack.c.bf16 %v1133, %v1132
          %v1195 = vpack.c.bf16 %v1135, %v1134
          %v1196 = vpack.c.bf16 %v1137, %v1136
          %v1197 = vpack.c.bf16 %v1139, %v1138
          %v1198 = vpack.c.bf16 %v1141, %v1140
          %v1199 = vpack.c.bf16 %v1143, %v1142
          %v1200 = vpack.c.bf16 %v1145, %v1144
          %v1201 = vpack.c.bf16 %v1147, %v1146
          %v1202 = vpack.c.bf16 %v1149, %v1148
          %v1203 = vpack.c.bf16 %v1151, %v1150
          %v1204 = vpack.c.bf16 %v1153, %v1152
          %v1205 = vpack.c.bf16 %v1155, %v1154
          %v1206 = vpack.c.bf16 %v1157, %v1156
          %v1207 = vpack.c.bf16 %v1159, %v1158
          %v1208 = vpack.c.bf16 %v1161, %v1160
          %v1209 = vpack.c.bf16 %v1163, %v1162
          %v1210 = vpack.c.bf16 %v1165, %v1164
          %v1211 = vpack.c.bf16 %v1167, %v1166
          %v1212 = vpack.c.bf16 %v1169, %v1168
          %v1213 = vpack.c.bf16 %v1171, %v1170
          %v1214 = vpack.c.bf16 %v1173, %v1172
          %v1215 = vpack.c.bf16 %v1175, %v1174
          %v1216 = vpack.c.bf16 %v1177, %v1176
          %v1217 = vpack.c.bf16 %v1179, %v1178
          %v1218 = vpack.c.bf16 %v1181, %v1180
          %v1219 = vpack.c.bf16 %v1183, %v1182
          %v1220 = vpack.c.bf16 %v1185, %v1184
          %v1221 = vpack.c.bf16 %v1187, %v1186
          %v1222 = vpack.c.bf16 %v1189, %v1188
          %v1223 = vpack.c.bf16 %v1191, %v1190
          %v1256 = vunpack.c.l.b16 %v1192
          %v1257 = vunpack.c.h.b16 %v1192
          %v1258 = vunpack.c.l.b16 %v1193
          %v1259 = vunpack.c.h.b16 %v1193
          %v1260 = vunpack.c.l.b16 %v1194
          %v1261 = vunpack.c.h.b16 %v1194
          %v1262 = vunpack.c.l.b16 %v1195
          %v1263 = vunpack.c.h.b16 %v1195
          %v1264 = vunpack.c.l.b16 %v1196
          %v1265 = vunpack.c.h.b16 %v1196
          %v1266 = vunpack.c.l.b16 %v1197
          %v1267 = vunpack.c.h.b16 %v1197
          %v1268 = vunpack.c.l.b16 %v1198
          %v1269 = vunpack.c.h.b16 %v1198
          %v1270 = vunpack.c.l.b16 %v1199
          %v1271 = vunpack.c.h.b16 %v1199
          %v1272 = vunpack.c.l.b16 %v1200
          %v1273 = vunpack.c.h.b16 %v1200
          %v1274 = vunpack.c.l.b16 %v1201
          %v1275 = vunpack.c.h.b16 %v1201
          %v1276 = vunpack.c.l.b16 %v1202
          %v1277 = vunpack.c.h.b16 %v1202
          %v1278 = vunpack.c.l.b16 %v1203
          %v1279 = vunpack.c.h.b16 %v1203
          %v1280 = vunpack.c.l.b16 %v1204
          %v1281 = vunpack.c.h.b16 %v1204
          %v1282 = vunpack.c.l.b16 %v1205
          %v1283 = vunpack.c.h.b16 %v1205
          %v1284 = vunpack.c.l.b16 %v1206
          %v1285 = vunpack.c.h.b16 %v1206
          %v1286 = vunpack.c.l.b16 %v1207
          %v1287 = vunpack.c.h.b16 %v1207
          %v1288 = vunpack.c.l.b16 %v1208
          %v1289 = vunpack.c.h.b16 %v1208
          %v1290 = vunpack.c.l.b16 %v1209
          %v1291 = vunpack.c.h.b16 %v1209
          %v1292 = vunpack.c.l.b16 %v1210
          %v1293 = vunpack.c.h.b16 %v1210
          %v1294 = vunpack.c.l.b16 %v1211
          %v1295 = vunpack.c.h.b16 %v1211
          %v1296 = vunpack.c.l.b16 %v1212
          %v1297 = vunpack.c.h.b16 %v1212
          %v1298 = vunpack.c.l.b16 %v1213
          %v1299 = vunpack.c.h.b16 %v1213
          %v1300 = vunpack.c.l.b16 %v1214
          %v1301 = vunpack.c.h.b16 %v1214
          %v1302 = vunpack.c.l.b16 %v1215
          %v1303 = vunpack.c.h.b16 %v1215
          %v1304 = vunpack.c.l.b16 %v1216
          %v1305 = vunpack.c.h.b16 %v1216
          %v1306 = vunpack.c.l.b16 %v1217
          %v1307 = vunpack.c.h.b16 %v1217
          %v1308 = vunpack.c.l.b16 %v1218
          %v1309 = vunpack.c.h.b16 %v1218
          %v1310 = vunpack.c.l.b16 %v1219
          %v1311 = vunpack.c.h.b16 %v1219
          %v1312 = vunpack.c.l.b16 %v1220
          %v1313 = vunpack.c.h.b16 %v1220
          %v1314 = vunpack.c.l.b16 %v1221
          %v1315 = vunpack.c.h.b16 %v1221
          %v1316 = vunpack.c.l.b16 %v1222
          %v1317 = vunpack.c.h.b16 %v1222
          %v1318 = vunpack.c.l.b16 %v1223
          %v1319 = vunpack.c.h.b16 %v1223
          %v1320 = vpack.c.b16 %v1256, %v1256
          %v1321 = vpack.c.b16 %v1257, %v1257
          %v1322 = vpack.c.b16 %v1258, %v1258
          %v1323 = vpack.c.b16 %v1259, %v1259
          %v1324 = vpack.c.b16 %v1260, %v1260
          %v1325 = vpack.c.b16 %v1261, %v1261
          %v1326 = vpack.c.b16 %v1262, %v1262
          %v1327 = vpack.c.b16 %v1263, %v1263
          %v1328 = vpack.c.b16 %v1264, %v1264
          %v1329 = vpack.c.b16 %v1265, %v1265
          %v1330 = vpack.c.b16 %v1266, %v1266
          %v1331 = vpack.c.b16 %v1267, %v1267
          %v1332 = vpack.c.b16 %v1268, %v1268
          %v1333 = vpack.c.b16 %v1269, %v1269
          %v1334 = vpack.c.b16 %v1270, %v1270
          %v1335 = vpack.c.b16 %v1271, %v1271
          %v1336 = vpack.c.b16 %v1272, %v1272
          %v1337 = vpack.c.b16 %v1273, %v1273
          %v1338 = vpack.c.b16 %v1274, %v1274
          %v1339 = vpack.c.b16 %v1275, %v1275
          %v1340 = vpack.c.b16 %v1276, %v1276
          %v1341 = vpack.c.b16 %v1277, %v1277
          %v1342 = vpack.c.b16 %v1278, %v1278
          %v1343 = vpack.c.b16 %v1279, %v1279
          %v1344 = vpack.c.b16 %v1280, %v1280
          %v1345 = vpack.c.b16 %v1281, %v1281
          %v1346 = vpack.c.b16 %v1282, %v1282
          %v1347 = vpack.c.b16 %v1283, %v1283
          %v1348 = vpack.c.b16 %v1284, %v1284
          %v1349 = vpack.c.b16 %v1285, %v1285
          %v1350 = vpack.c.b16 %v1286, %v1286
          %v1351 = vpack.c.b16 %v1287, %v1287
          %v1352 = vpack.c.b16 %v1288, %v1288
          %v1353 = vpack.c.b16 %v1289, %v1289
          %v1354 = vpack.c.b16 %v1290, %v1290
          %v1355 = vpack.c.b16 %v1291, %v1291
          %v1356 = vpack.c.b16 %v1292, %v1292
          %v1357 = vpack.c.b16 %v1293, %v1293
          %v1358 = vpack.c.b16 %v1294, %v1294
          %v1359 = vpack.c.b16 %v1295, %v1295
          %v1360 = vpack.c.b16 %v1296, %v1296
          %v1361 = vpack.c.b16 %v1297, %v1297
          %v1362 = vpack.c.b16 %v1298, %v1298
          %v1363 = vpack.c.b16 %v1299, %v1299
          %v1364 = vpack.c.b16 %v1300, %v1300
          %v1365 = vpack.c.b16 %v1301, %v1301
          %v1366 = vpack.c.b16 %v1302, %v1302
          %v1367 = vpack.c.b16 %v1303, %v1303
          %v1368 = vpack.c.b16 %v1304, %v1304
          %v1369 = vpack.c.b16 %v1305, %v1305
          %v1370 = vpack.c.b16 %v1306, %v1306
          %v1371 = vpack.c.b16 %v1307, %v1307
          %v1372 = vpack.c.b16 %v1308, %v1308
          %v1373 = vpack.c.b16 %v1309, %v1309
          %v1374 = vpack.c.b16 %v1310, %v1310
          %v1375 = vpack.c.b16 %v1311, %v1311
          %v1376 = vpack.c.b16 %v1312, %v1312
          %v1377 = vpack.c.b16 %v1313, %v1313
          %v1378 = vpack.c.b16 %v1314, %v1314
          %v1379 = vpack.c.b16 %v1315, %v1315
          %v1380 = vpack.c.b16 %v1316, %v1316
          %v1381 = vpack.c.b16 %v1317, %v1317
          %v1382 = vpack.c.b16 %v1318, %v1318
          %v1383 = vpack.c.b16 %v1319, %v1319
          %1448 = vst [vmem:[%s244] sm:$0xf] %v1320
          %1449 = vst [vmem:[%s244 + $0x4] sm:$0xf] %v1321
          %1450 = vst [vmem:[%s244 + $0x8] sm:$0xf] %v1322
          %1451 = vst [vmem:[%s244 + $0xc] sm:$0xf] %v1323
          %1452 = vst [vmem:[%s244 + $0x10] sm:$0xf] %v1324
          %1453 = vst [vmem:[%s244 + $0x14] sm:$0xf] %v1325
          %1454 = vst [vmem:[%s244 + $0x18] sm:$0xf] %v1326
          %1455 = vst [vmem:[%s244 + $0x1c] sm:$0xf] %v1327
          %1456 = vst [vmem:[%s244 + $0x20] sm:$0xf] %v1328
          %1457 = vst [vmem:[%s244 + $0x24] sm:$0xf] %v1329
          %1458 = vst [vmem:[%s244 + $0x28] sm:$0xf] %v1330
          %1459 = vst [vmem:[%s244 + $0x2c] sm:$0xf] %v1331
          %1460 = vst [vmem:[%s244 + $0x30] sm:$0xf] %v1332
          %1461 = vst [vmem:[%s244 + $0x34] sm:$0xf] %v1333
          %1462 = vst [vmem:[%s244 + $0x38] sm:$0xf] %v1334
          %1463 = vst [vmem:[%s244 + $0x3c] sm:$0xf] %v1335
          %1464 = vst [vmem:[%s244 + $0x40] sm:$0xf] %v1336
          %1465 = vst [vmem:[%s244 + $0x44] sm:$0xf] %v1337
          %1466 = vst [vmem:[%s244 + $0x48] sm:$0xf] %v1338
          %1467 = vst [vmem:[%s244 + $0x4c] sm:$0xf] %v1339
          %1468 = vst [vmem:[%s244 + $0x50] sm:$0xf] %v1340
          %1469 = vst [vmem:[%s244 + $0x54] sm:$0xf] %v1341
          %1470 = vst [vmem:[%s244 + $0x58] sm:$0xf] %v1342
          %1471 = vst [vmem:[%s244 + $0x5c] sm:$0xf] %v1343
          %1472 = vst [vmem:[%s244 + $0x60] sm:$0xf] %v1344
          %1473 = vst [vmem:[%s244 + $0x64] sm:$0xf] %v1345
          %1474 = vst [vmem:[%s244 + $0x68] sm:$0xf] %v1346
          %1475 = vst [vmem:[%s244 + $0x6c] sm:$0xf] %v1347
          %1476 = vst [vmem:[%s244 + $0x70] sm:$0xf] %v1348
          %1477 = vst [vmem:[%s244 + $0x74] sm:$0xf] %v1349
          %1478 = vst [vmem:[%s244 + $0x78] sm:$0xf] %v1350
          %1479 = vst [vmem:[%s244 + $0x7c] sm:$0xf] %v1351
          %1480 = vst [vmem:[%s244 + $0x80] sm:$0xf] %v1352
          %1481 = vst [vmem:[%s244 + $0x84] sm:$0xf] %v1353
          %1482 = vst [vmem:[%s244 + $0x88] sm:$0xf] %v1354
          %1483 = vst [vmem:[%s244 + $0x8c] sm:$0xf] %v1355
          %1484 = vst [vmem:[%s244 + $0x90] sm:$0xf] %v1356
          %1485 = vst [vmem:[%s244 + $0x94] sm:$0xf] %v1357
          %1486 = vst [vmem:[%s244 + $0x98] sm:$0xf] %v1358
          %1487 = vst [vmem:[%s244 + $0x9c] sm:$0xf] %v1359
          %1488 = vst [vmem:[%s244 + $0xa0] sm:$0xf] %v1360
          %1489 = vst [vmem:[%s244 + $0xa4] sm:$0xf] %v1361
          %1490 = vst [vmem:[%s244 + $0xa8] sm:$0xf] %v1362
          %1491 = vst [vmem:[%s244 + $0xac] sm:$0xf] %v1363
          %1492 = vst [vmem:[%s244 + $0xb0] sm:$0xf] %v1364
          %1493 = vst [vmem:[%s244 + $0xb4] sm:$0xf] %v1365
          %1494 = vst [vmem:[%s244 + $0xb8] sm:$0xf] %v1366
          %1495 = vst [vmem:[%s244 + $0xbc] sm:$0xf] %v1367
          %1496 = vst [vmem:[%s244 + $0xc0] sm:$0xf] %v1368
          %1497 = vst [vmem:[%s244 + $0xc4] sm:$0xf] %v1369
          %1498 = vst [vmem:[%s244 + $0xc8] sm:$0xf] %v1370
          %1499 = vst [vmem:[%s244 + $0xcc] sm:$0xf] %v1371
          %1500 = vst [vmem:[%s244 + $0xd0] sm:$0xf] %v1372
          %1501 = vst [vmem:[%s244 + $0xd4] sm:$0xf] %v1373
          %1502 = vst [vmem:[%s244 + $0xd8] sm:$0xf] %v1374
          %1503 = vst [vmem:[%s244 + $0xdc] sm:$0xf] %v1375
          %1504 = vst [vmem:[%s244 + $0xe0] sm:$0xf] %v1376
          %1505 = vst [vmem:[%s244 + $0xe4] sm:$0xf] %v1377
          %1506 = vst [vmem:[%s244 + $0xe8] sm:$0xf] %v1378
          %1507 = vst [vmem:[%s244 + $0xec] sm:$0xf] %v1379
          %1508 = vst [vmem:[%s244 + $0xf0] sm:$0xf] %v1380
          %1509 = vst [vmem:[%s244 + $0xf4] sm:$0xf] %v1381
          %1510 = vst [vmem:[%s244 + $0xf8] sm:$0xf] %v1382
          %1511 = vst [vmem:[%s244 + $0xfc] sm:$0xf] %v1383
          %v1512 = vadd.f32 %v1128, %v1129
          %v1513 = vadd.f32 %v1512, %v1130
          %v1514 = vadd.f32 %v1513, %v1131
          %v1515 = vadd.f32 %v1514, %v1132
          %v1516 = vadd.f32 %v1515, %v1133
          %v1517 = vadd.f32 %v1516, %v1134
          %v1518 = vadd.f32 %v1517, %v1135
          %v1519 = vadd.f32 %v1518, %v1136
          %v1520 = vadd.f32 %v1519, %v1137
          %v1521 = vadd.f32 %v1520, %v1138
          %v1522 = vadd.f32 %v1521, %v1139
          %v1523 = vadd.f32 %v1522, %v1140
          %v1524 = vadd.f32 %v1523, %v1141
          %v1525 = vadd.f32 %v1524, %v1142
          %v1526 = vadd.f32 %v1525, %v1143
          %v1527 = vadd.f32 %v1526, %v1144
          %v1528 = vadd.f32 %v1527, %v1145
          %v1529 = vadd.f32 %v1528, %v1146
          %v1530 = vadd.f32 %v1529, %v1147
          %v1531 = vadd.f32 %v1530, %v1148
          %v1532 = vadd.f32 %v1531, %v1149
          %v1533 = vadd.f32 %v1532, %v1150
          %v1534 = vadd.f32 %v1533, %v1151
          %v1535 = vadd.f32 %v1534, %v1152
          %v1536 = vadd.f32 %v1535, %v1153
          %v1537 = vadd.f32 %v1536, %v1154
          %v1538 = vadd.f32 %v1537, %v1155
          %v1539 = vadd.f32 %v1538, %v1156
          %v1540 = vadd.f32 %v1539, %v1157
          %v1541 = vadd.f32 %v1540, %v1158
          %v1542 = vadd.f32 %v1541, %v1159
          %v1543 = vadd.f32 %v1542, %v1160
          %v1544 = vadd.f32 %v1543, %v1161
          %v1545 = vadd.f32 %v1544, %v1162
          %v1546 = vadd.f32 %v1545, %v1163
          %v1547 = vadd.f32 %v1546, %v1164
          %v1548 = vadd.f32 %v1547, %v1165
          %v1549 = vadd.f32 %v1548, %v1166
          %v1550 = vadd.f32 %v1549, %v1167
          %v1551 = vadd.f32 %v1550, %v1168
          %v1552 = vadd.f32 %v1551, %v1169
          %v1553 = vadd.f32 %v1552, %v1170
          %v1554 = vadd.f32 %v1553, %v1171
          %v1555 = vadd.f32 %v1554, %v1172
          %v1556 = vadd.f32 %v1555, %v1173
          %v1557 = vadd.f32 %v1556, %v1174
          %v1558 = vadd.f32 %v1557, %v1175
          %v1559 = vadd.f32 %v1558, %v1176
          %v1560 = vadd.f32 %v1559, %v1177
          %v1561 = vadd.f32 %v1560, %v1178
          %v1562 = vadd.f32 %v1561, %v1179
          %v1563 = vadd.f32 %v1562, %v1180
          %v1564 = vadd.f32 %v1563, %v1181
          %v1565 = vadd.f32 %v1564, %v1182
          %v1566 = vadd.f32 %v1565, %v1183
          %v1567 = vadd.f32 %v1566, %v1184
          %v1568 = vadd.f32 %v1567, %v1185
          %v1569 = vadd.f32 %v1568, %v1186
          %v1570 = vadd.f32 %v1569, %v1187
          %v1571 = vadd.f32 %v1570, %v1188
          %v1572 = vadd.f32 %v1571, %v1189
          %v1573 = vadd.f32 %v1572, %v1190
          %v1574 = vadd.f32 %v1573, %v1191
          %v1575 = vrot.slane %v1574, 4
          %v1576 = vadd.f32 %v1574, %v1575
          %v1577 = vrot.slane %v1576, 2
          %v1578 = vadd.f32 %v1576, %v1577
          %v1579 = vrot.slane %v1578, 1
          %v1580 = vadd.f32 %v1578, %v1579
          %1581 = vst [vmem:[%s251] sm:$0x1] %v1580
          %v1582 = vmul.f32 %v1128, %v1128
          %v1583 = vmul.f32 %v1129, %v1129
          %v1584 = vmul.f32 %v1130, %v1130
          %v1585 = vmul.f32 %v1131, %v1131
          %v1586 = vmul.f32 %v1132, %v1132
          %v1587 = vmul.f32 %v1133, %v1133
          %v1588 = vmul.f32 %v1134, %v1134
          %v1589 = vmul.f32 %v1135, %v1135
          %v1590 = vmul.f32 %v1136, %v1136
          %v1591 = vmul.f32 %v1137, %v1137
          %v1592 = vmul.f32 %v1138, %v1138
          %v1593 = vmul.f32 %v1139, %v1139
          %v1594 = vmul.f32 %v1140, %v1140
          %v1595 = vmul.f32 %v1141, %v1141
          %v1596 = vmul.f32 %v1142, %v1142
          %v1597 = vmul.f32 %v1143, %v1143
          %v1598 = vmul.f32 %v1144, %v1144
          %v1599 = vmul.f32 %v1145, %v1145
          %v1600 = vmul.f32 %v1146, %v1146
          %v1601 = vmul.f32 %v1147, %v1147
          %v1602 = vmul.f32 %v1148, %v1148
          %v1603 = vmul.f32 %v1149, %v1149
          %v1604 = vmul.f32 %v1150, %v1150
          %v1605 = vmul.f32 %v1151, %v1151
          %v1606 = vmul.f32 %v1152, %v1152
          %v1607 = vmul.f32 %v1153, %v1153
          %v1608 = vmul.f32 %v1154, %v1154
          %v1609 = vmul.f32 %v1155, %v1155
          %v1610 = vmul.f32 %v1156, %v1156
          %v1611 = vmul.f32 %v1157, %v1157
          %v1612 = vmul.f32 %v1158, %v1158
          %v1613 = vmul.f32 %v1159, %v1159
          %v1614 = vmul.f32 %v1160, %v1160
          %v1615 = vmul.f32 %v1161, %v1161
          %v1616 = vmul.f32 %v1162, %v1162
          %v1617 = vmul.f32 %v1163, %v1163
          %v1618 = vmul.f32 %v1164, %v1164
          %v1619 = vmul.f32 %v1165, %v1165
          %v1620 = vmul.f32 %v1166, %v1166
          %v1621 = vmul.f32 %v1167, %v1167
          %v1622 = vmul.f32 %v1168, %v1168
          %v1623 = vmul.f32 %v1169, %v1169
          %v1624 = vmul.f32 %v1170, %v1170
          %v1625 = vmul.f32 %v1171, %v1171
          %v1626 = vmul.f32 %v1172, %v1172
          %v1627 = vmul.f32 %v1173, %v1173
          %v1628 = vmul.f32 %v1174, %v1174
          %v1629 = vmul.f32 %v1175, %v1175
          %v1630 = vmul.f32 %v1176, %v1176
          %v1631 = vmul.f32 %v1177, %v1177
          %v1632 = vmul.f32 %v1178, %v1178
          %v1633 = vmul.f32 %v1179, %v1179
          %v1634 = vmul.f32 %v1180, %v1180
          %v1635 = vmul.f32 %v1181, %v1181
          %v1636 = vmul.f32 %v1182, %v1182
          %v1637 = vmul.f32 %v1183, %v1183
          %v1638 = vmul.f32 %v1184, %v1184
          %v1639 = vmul.f32 %v1185, %v1185
          %v1640 = vmul.f32 %v1186, %v1186
          %v1641 = vmul.f32 %v1187, %v1187
          %v1642 = vmul.f32 %v1188, %v1188
          %v1643 = vmul.f32 %v1189, %v1189
          %v1644 = vmul.f32 %v1190, %v1190
          %v1645 = vmul.f32 %v1191, %v1191
          %v1646 = vadd.f32 %v1582, %v1583
          %v1647 = vadd.f32 %v1646, %v1584
          %v1648 = vadd.f32 %v1647, %v1585
          %v1649 = vadd.f32 %v1648, %v1586
          %v1650 = vadd.f32 %v1649, %v1587
          %v1651 = vadd.f32 %v1650, %v1588
          %v1652 = vadd.f32 %v1651, %v1589
          %v1653 = vadd.f32 %v1652, %v1590
          %v1654 = vadd.f32 %v1653, %v1591
          %v1655 = vadd.f32 %v1654, %v1592
          %v1656 = vadd.f32 %v1655, %v1593
          %v1657 = vadd.f32 %v1656, %v1594
          %v1658 = vadd.f32 %v1657, %v1595
          %v1659 = vadd.f32 %v1658, %v1596
          %v1660 = vadd.f32 %v1659, %v1597
          %v1661 = vadd.f32 %v1660, %v1598
          %v1662 = vadd.f32 %v1661, %v1599
          %v1663 = vadd.f32 %v1662, %v1600
          %v1664 = vadd.f32 %v1663, %v1601
          %v1665 = vadd.f32 %v1664, %v1602
          %v1666 = vadd.f32 %v1665, %v1603
          %v1667 = vadd.f32 %v1666, %v1604
          %v1668 = vadd.f32 %v1667, %v1605
          %v1669 = vadd.f32 %v1668, %v1606
          %v1670 = vadd.f32 %v1669, %v1607
          %v1671 = vadd.f32 %v1670, %v1608
          %v1672 = vadd.f32 %v1671, %v1609
          %v1673 = vadd.f32 %v1672, %v1610
          %v1674 = vadd.f32 %v1673, %v1611
          %v1675 = vadd.f32 %v1674, %v1612
          %v1676 = vadd.f32 %v1675, %v1613
          %v1677 = vadd.f32 %v1676, %v1614
          %v1678 = vadd.f32 %v1677, %v1615
          %v1679 = vadd.f32 %v1678, %v1616
          %v1680 = vadd.f32 %v1679, %v1617
          %v1681 = vadd.f32 %v1680, %v1618
          %v1682 = vadd.f32 %v1681, %v1619
          %v1683 = vadd.f32 %v1682, %v1620
          %v1684 = vadd.f32 %v1683, %v1621
          %v1685 = vadd.f32 %v1684, %v1622
          %v1686 = vadd.f32 %v1685, %v1623
          %v1687 = vadd.f32 %v1686, %v1624
          %v1688 = vadd.f32 %v1687, %v1625
          %v1689 = vadd.f32 %v1688, %v1626
          %v1690 = vadd.f32 %v1689, %v1627
          %v1691 = vadd.f32 %v1690, %v1628
          %v1692 = vadd.f32 %v1691, %v1629
          %v1693 = vadd.f32 %v1692, %v1630
          %v1694 = vadd.f32 %v1693, %v1631
          %v1695 = vadd.f32 %v1694, %v1632
          %v1696 = vadd.f32 %v1695, %v1633
          %v1697 = vadd.f32 %v1696, %v1634
          %v1698 = vadd.f32 %v1697, %v1635
          %v1699 = vadd.f32 %v1698, %v1636
          %v1700 = vadd.f32 %v1699, %v1637
          %v1701 = vadd.f32 %v1700, %v1638
          %v1702 = vadd.f32 %v1701, %v1639
          %v1703 = vadd.f32 %v1702, %v1640
          %v1704 = vadd.f32 %v1703, %v1641
          %v1705 = vadd.f32 %v1704, %v1642
          %v1706 = vadd.f32 %v1705, %v1643
          %v1707 = vadd.f32 %v1706, %v1644
          %v1708 = vadd.f32 %v1707, %v1645
          %v1709 = vrot.slane %v1708, 4
          %v1710 = vadd.f32 %v1708, %v1709
          %v1711 = vrot.slane %v1710, 2
          %v1712 = vadd.f32 %v1710, %v1711
          %v1713 = vrot.slane %v1712, 1
          %v1714 = vadd.f32 %v1712, %v1713
          %1715 = vst [vmem:[%s251 + $0x1] sm:$0x1] %v1714
        $region44: #{tpu_custom_call.1} parent=27 // pred_fallthru
          _
        %s1716 = sand.u32 %s110, 1
        %s1717 = scalar_lea.sflag [#allocation5], %s1716
        %s1718 = sand.u32 %s110, 1
        %s1719 = smul.addr %s1718, 256
        %s1720 = scalar_lea.vmem [#allocation8], %s1719
        %s1721 = sand.u32 %s138, 1
        %s1722 = scalar_lea.sflag [#allocation10], %s1721
        %s1723 = sand.u32 %s138, 1
        %s1724 = smul.addr %s1723, 2
        %s1725 = scalar_lea.vmem [#allocation9], %s1724
        // Predicated region
        $region45: #{tpu_custom_call.1} parent=27 // pred_check
          %p1726 = pneg %p120
        $region46: #{tpu_custom_call.1} parent=27 // pred_check_branch
          %1728 = sbr.rel (%p1726) target = $region48
        $region47: #{tpu_custom_call.1} parent=27 // pred_region
          %s1729 = smul.u32 64, %s30
          %s1731 = ssub.s32 4096, 4096
          %1732 = vsyncadd %s1717, %s1731
          %s1733 = sadd.s32 %s31, %s1729
          %s1734 = smul.addr %s1733, 64
          %s1735 = scalar_lea.hbm %s2, %s1734
          %s1736 = sshll.u32 %s1720, 4
          %s1737 = int_to_ptr.vmem [resolvable:$true] %s1736
          %1742 = dma.vmem_to_hbm [thread:$0]  %s1737, 4096, %s1735, %s1717, 64, 64, 4
        $region48: #{tpu_custom_call.1} parent=27 // pred_fallthru
          _
        // Predicated region
        $region49: #{tpu_custom_call.1} parent=27 // pred_check
          %p1743 = pneg %p148
        $region50: #{tpu_custom_call.1} parent=27 // pred_check_branch
          %1745 = sbr.rel (%p1743) target = $region52
        $region51: #{tpu_custom_call.1} parent=27 // pred_region
          %s1747 = ssub.s32 32, 32
          %1748 = vsyncadd %s1722, %s1747
          %s1749 = sadd.s32 %s31, %s30
          %s1750 = smul.addr %s1749, 32
          %s1751 = scalar_lea.hbm %s3, %s1750
          %s1753 = sshll.u32 %s1725, 4
          %s1754 = int_to_ptr.vmem [resolvable:$true] %s1753
          %1756 = dma.vmem_to_hbm [thread:$0]  %s1754, 32, %s1751, %s1722
        $region52: #{tpu_custom_call.1} parent=27 // pred_fallthru
          _
      $region28: #{tpu_custom_call.1} parent=5 // pred_fallthru
        _
      %p1757 = scmp.le.s32.totalorder 2, %s20
      // Predicated region
      $region53: #{tpu_custom_call.1} parent=5 // pred_check
        %p1758 = pneg %p1757
      $region54: #{tpu_custom_call.1} parent=5 // pred_check_branch
        %1760 = sbr.rel (%p1758) target = $region56
      $region55: #{tpu_custom_call.1} parent=5 // pred_region
        %s1761 = ssub.s32 %s20, 2
        // Predicated region
        $region57: #{tpu_custom_call.1} parent=55 // pred_check
          %p1762 = pneg %p126
        $region58: #{tpu_custom_call.1} parent=55 // pred_check_branch
          %1764 = sbr.rel (%p1762) target = $region60
        $region59: #{tpu_custom_call.1} parent=55 // pred_region
          %s1765 = sand.u32 %s111, 1
          %s1766 = scalar_lea.sflag [#allocation5], %s1765
          %s1767 = sand.u32 %s111, 1
          %s1768 = smul.addr %s1767, 256
          %s1769 = scalar_lea.vmem [#allocation8], %s1768
          %1770 = dma.done %s1766, 4096
        $region60: #{tpu_custom_call.1} parent=55 // pred_fallthru
          _
        // Predicated region
        $region61: #{tpu_custom_call.1} parent=55 // pred_check
          %p1771 = pneg %p154
        $region62: #{tpu_custom_call.1} parent=55 // pred_check_branch
          %1773 = sbr.rel (%p1771) target = $region64
        $region63: #{tpu_custom_call.1} parent=55 // pred_region
          %s1774 = sand.u32 %s139, 1
          %s1775 = scalar_lea.sflag [#allocation10], %s1774
          %s1776 = sand.u32 %s139, 1
          %s1777 = smul.addr %s1776, 2
          %s1778 = scalar_lea.vmem [#allocation9], %s1777
          %1779 = dma.done %s1775, 32
        $region64: #{tpu_custom_call.1} parent=55 // pred_fallthru
          _
      $region56: #{tpu_custom_call.1} parent=5 // pred_fallthru
        _
    $region6: #{tpu_custom_call.1} parent=1 // loop_footer
      %s24 = sadd.s32 1, %s20
    $region7: #{tpu_custom_call.1} parent=1 // loop_footer_branch
      %19 = sbr.rel target = $region3
    $region8: #{tpu_custom_call.1} parent=1 // loop_exit
      _
    %1780 = vsyncpa [#allocation4], 1
    %s1781 = scalar_lea.sflag [#allocation4], 1
    %1782 = vsyncpa %s1781, 1
    %1783 = vsyncpa [#allocation7], 1
    %1784 = vsyncpa [#allocation5], 1
    %s1785 = scalar_lea.sflag [#allocation5], 1
    %1786 = vsyncpa %s1785, 1
    %1787 = vsyncpa [#allocation10], 1
    %s1788 = scalar_lea.sflag [#allocation10], 1
    %1789 = vsyncpa %s1788, 1

</llo_original>
